<compile_context>
chip_gen: v5e
topology: v5e:2x2
jax: 0.10.0
libtpu: 0.0.40
codegen_flags: <defaults>
</compile_context>

<pallas_src>
import functools
from dataclasses import dataclass

import jax
import jax.numpy as jnp
from jax import lax
from jax.experimental import pallas as pl
from jax.experimental.pallas import tpu as pltpu


# ----------------------------------------------------------------------------
# Fused Pallas kernel: L LSTM layers + linear head (one batch block per grid pt)
# ----------------------------------------------------------------------------
def make_lstm_head_kernel(num_layers, T, B, H, C, last_only, unroll):
    """Kernel for fixed static sizes; B is the per-block (padded) batch size.

    Ref layout (positional):
      x_ref                       (T, B, D_in)   time-major input block
      wih_0..wih_{L-1}            (D_in|H, 4H)   W_ih^T per layer
      whh_0..whh_{L-1}            (H, 4H)        W_hh^T per layer
      b_0..b_{L-1}                (1, 4H)        b_ih + b_hh per layer
      wlin                        (H, C)         linear head weight^T
      blin                        (1, C)         linear head bias
      out_ref                     (T|1, B, C)    head output block
      scratch: seq (T,B,H), gates_x (T,B,4H)
    """
    L = num_layers

    def kernel(x_ref, *refs):
        wih_refs = refs[0:L]
        whh_refs = refs[L:2 * L]
        b_refs = refs[2 * L:3 * L]
        wlin_ref = refs[3 * L]
        blin_ref = refs[3 * L + 1]
        out_ref = refs[3 * L + 2]
        seq_scr = refs[3 * L + 3]      # (T, B, H)   inter-layer activations
        gx_scr = refs[3 * L + 4]       # (T, B, 4H)  hoisted input projection

        h_last_final = None
        for layer in range(L):
            # ---- hoisted input projection: one big matmul for all T steps ----
            if layer == 0:
                d_in = x_ref.shape[-1]
                x_all = x_ref[...].reshape(T * B, d_in)
            else:
                x_all = seq_scr[...].reshape(T * B, H)
            gx = (jnp.dot(x_all, wih_refs[layer][...],
                          preferred_element_type=jnp.float32)
                  + b_refs[layer][...])
            gx_scr[...] = gx.reshape(T, B, 4 * H)

            whh = whh_refs[layer][...]            # (H, 4H), loaded once
            # Final layer in last_only mode never needs the full sequence.
            write_seq = not (last_only and layer == L - 1)

            def step(t, carry, _whh=whh, _write_seq=write_seq):
                h, c = carry                       # vreg-resident, no VMEM trip
                # only the recurrent matmul remains on the serial path
                gates = gx_scr[t] + jnp.dot(h, _whh,
                                            preferred_element_type=jnp.float32)
                # 2 EUP ops over the full lane-dense (B, 4H) vreg, then slab
                # selection (VPU/XLU), instead of 4 quarter-lane transcendentals.
                sig = jax.nn.sigmoid(gates)
                th = jnp.tanh(gates)
                # PyTorch gate order: i, f, g, o
                i_g = sig[:, 0 * H:1 * H]
                f_g = sig[:, 1 * H:2 * H]
                g_g = th[:, 2 * H:3 * H]
                o_g = sig[:, 3 * H:4 * H]
                c_new = f_g * c + i_g * g_g
                h_new = o_g * jnp.tanh(c_new)      # 3rd (and last) EUP op
                if _write_seq:
                    seq_scr[t] = h_new             # only per-step store left
                return (h_new, c_new)

            zeros = jnp.zeros((B, H), jnp.float32)
            h_fin, _ = lax.fori_loop(0, T, step, (zeros, zeros), unroll=unroll)
            if layer == L - 1:
                h_last_final = h_fin

        # ---- fused linear head (no (T,B,H) HBM writeback / extra launch) ----
        wlin = wlin_ref[...]
        blin = blin_ref[...]
        if last_only:
            out = (jnp.dot(h_last_final, wlin,
                           preferred_element_type=jnp.float32) + blin)
            out_ref[...] = out.reshape(1, B, C)
        else:
            h_all = seq_scr[...].reshape(T * B, H)
            out = (jnp.dot(h_all, wlin,
                           preferred_element_type=jnp.float32) + blin)
            out_ref[...] = out.reshape(T, B, C)

    return kernel


# ----------------------------------------------------------------------------
# Wrappers
# ----------------------------------------------------------------------------
def preprocess_params(params):
    """One-time prep: transpose weights, pre-sum biases (no per-call work)."""
    lstm = []
    for (w_ih, w_hh, b_ih, b_hh) in params["lstm"]:
        lstm.append((
            jnp.asarray(w_ih, jnp.float32).T,                      # (D_in, 4H)
            jnp.asarray(w_hh, jnp.float32).T,                      # (H, 4H)
            (b_ih + b_hh).astype(jnp.float32).reshape(1, -1),      # (1, 4H)
        ))
    return {
        "lstm": lstm,
        "lin_w": jnp.asarray(params["lin_w"], jnp.float32).T,      # (H, C)
        "lin_b": jnp.asarray(params["lin_b"], jnp.float32).reshape(1, -1),
    }


def _pick_batch_block(b_pad):
    """Largest divisor of b_pad that is a multiple of 8 and <= 64."""
    if b_pad <= 64:
        return b_pad
    for cand in range(64, 7, -8):
        if b_pad % cand == 0:
            return cand
    return 8


@functools.partial(jax.jit, static_argnames=("test",))
def model_forward(x, pre, test=False):
    """Equivalent of Model.forward (eval semantics). x: (B, T, enc_in)."""
    B, T, D_in = x.shape
    L = len(pre["lstm"])
    H = pre["lstm"][0][1].shape[0]
    C = pre["lin_w"].shape[1]

    # Pad batch to sublane granularity (8): unmasked per-step stores.
    B_pad = ((B + 7) // 8) * 8
    x_tm = jnp.transpose(x.astype(jnp.float32), (1, 0, 2))        # (T, B, D)
    if B_pad != B:
        x_tm = jnp.pad(x_tm, ((0, 0), (0, B_pad - B), (0, 0)))

    B_blk = _pick_batch_block(B_pad)
    n_b = B_pad // B_blk
    T_out = 1 if test else T
    unroll = max(1, min(T, 8))      # bounded partial unroll of the time loop

    weights = ([w for (w, _, _) in pre["lstm"]]
               + [w for (_, w, _) in pre["lstm"]]
               + [b for (_, _, b) in pre["lstm"]]
               + [pre["lin_w"], pre["lin_b"]])

    def full_spec(arr):
        nd = arr.ndim
        return pl.BlockSpec(arr.shape, lambda b, _nd=nd: (0,) * _nd)

    in_specs = ([pl.BlockSpec((T, B_blk, D_in), lambda b: (0, b, 0))]
                + [full_spec(w) for w in weights])
    out_spec = pl.BlockSpec((T_out, B_blk, C), lambda b: (0, b, 0))

    # Explicit VMEM budget (v5e scoped default is only 16 MiB):
    # double-buffered blocked I/O + resident weights + per-block scratch.
    f32 = 4
    est = f32 * (2 * T * B_blk * D_in
                 + sum(int(w.size) for w in weights)
                 + 2 * T_out * B_blk * C
                 + T * B_blk * H
                 + T * B_blk * 4 * H)
    vmem_limit = int(min(max(2 * est + (4 << 20), 8 << 20), 64 << 20))

    out = pl.pallas_call(
        make_lstm_head_kernel(L, T, B_blk, H, C, last_only=test, unroll=unroll),
        out_shape=jax.ShapeDtypeStruct((T_out, B_pad, C), jnp.float32),
        grid=(n_b,),
        in_specs=in_specs,
        out_specs=out_spec,
        scratch_shapes=[
            pltpu.VMEM((T, B_blk, H), jnp.float32),        # inter-layer seq
            pltpu.VMEM((T, B_blk, 4 * H), jnp.float32),    # hoisted gates_x
        ],
        compiler_params=pltpu.CompilerParams(
            dimension_semantics=("parallel",),             # v7x megacore split
            vmem_limit_bytes=vmem_limit),
    )(x_tm, *weights)

    out = jnp.transpose(out, (1, 0, 2))[:B]                # (B, T_out, C)
    if C == 1:                                             # torch .squeeze(-1)
        out = out[..., 0]
    return out


# ----------------------------------------------------------------------------
# Pure-JAX reference (for correctness check)
# ----------------------------------------------------------------------------
def reference_forward(x, params, test=False):
    B, T, _ = x.shape
    h_seq = x.astype(jnp.float32)
    for (w_ih, w_hh, b_ih, b_hh) in params["lstm"]:
        H = w_hh.shape[1]

        def cell(carry, x_t):
            h, c = carry
            gates = x_t @ w_ih.T + h @ w_hh.T + b_ih + b_hh
            i = jax.nn.sigmoid(gates[:, 0 * H:1 * H])
            f = jax.nn.sigmoid(gates[:, 1 * H:2 * H])
            g = jnp.tanh(gates[:, 2 * H:3 * H])
            o = jax.nn.sigmoid(gates[:, 3 * H:4 * H])
            c = f * c + i * g
            h = o * jnp.tanh(c)
            return (h, c), h

        init = (jnp.zeros((B, H), jnp.float32), jnp.zeros((B, H), jnp.float32))
        _, ys = lax.scan(cell, init, jnp.transpose(h_seq, (1, 0, 2)))
        h_seq = jnp.transpose(ys, (1, 0, 2))
    out = h_seq @ params["lin_w"].T + params["lin_b"]
    if params["lin_w"].shape[0] == 1:
        out = out[..., 0]
    if test:
        out = out[:, -1:]
    return out


# ----------------------------------------------------------------------------
# Parameter init (deterministic, PyTorch-like U(-1/sqrt(H), 1/sqrt(H)))
# ----------------------------------------------------------------------------
@dataclass
class Configs:
    enc_in: int = 4
    d_model: int = 32
    e_layers: int = 2
    dropout: float = 0.1
    c_out: int = 1


def init_params(key, cfg: Configs):
    H = cfg.d_model
    bound = 1.0 / jnp.sqrt(H)
    lstm_params = []
    for layer in range(cfg.e_layers):
        d_in = cfg.enc_in if layer == 0 else H
        key, k1, k2, k3, k4 = jax.random.split(key, 5)
        w_ih = jax.random.uniform(k1, (4 * H, d_in), jnp.float32, -bound, bound)
        w_hh = jax.random.uniform(k2, (4 * H, H), jnp.float32, -bound, bound)
        b_ih = jax.random.uniform(k3, (4 * H,), jnp.float32, -bound, bound)
        b_hh = jax.random.uniform(k4, (4 * H,), jnp.float32, -bound, bound)
        lstm_params.append((w_ih, w_hh, b_ih, b_hh))
    key, k5, k6 = jax.random.split(key, 3)
    lin_w = jax.random.uniform(k5, (cfg.c_out, H), jnp.float32, -bound, bound)
    lin_b = jax.random.uniform(k6, (cfg.c_out,), jnp.float32, -bound, bound)
    return {"lstm": lstm_params, "lin_w": lin_w, "lin_b": lin_b}


if __name__ == "__main__":
    cfg = Configs()
    key = jax.random.PRNGKey(0)
    key, kx, kp = jax.random.split(key, 3)

    B, T = 2, 8
    x = jax.random.normal(kx, (B, T, cfg.enc_in), jnp.float32)
    params = init_params(kp, cfg)
    pre = preprocess_params(params)   # one-time weight prep (pre-transposed)

    out = jax.block_until_ready(model_forward(x, pre, test=False))
    assert out.shape == (B, T), out.shape
    ref = reference_forward(x, params, test=False)
    assert jnp.allclose(out, ref, atol=2e-3, rtol=2e-3), float(
        jnp.max(jnp.abs(out - ref)))

    out_test = jax.block_until_ready(model_forward(x, pre, test=True))
    assert out_test.shape == (B, 1), out_test.shape
    ref_test = reference_forward(x, params, test=True)
    assert jnp.allclose(out_test, ref_test, atol=2e-3, rtol=2e-3), float(
        jnp.max(jnp.abs(out_test - ref_test)))

    print("KERNEL_OK")
</pallas_src>

<mosaic_0001>
module attributes {stable_mosaic.version = 11 : i64} {
  func.func @kernel(%arg0: i32, %arg1: memref<8x8x4xf32, #tpu.memory_space<vmem>>, %arg2: memref<4x128xf32, #tpu.memory_space<vmem>>, %arg3: memref<32x128xf32, #tpu.memory_space<vmem>>, %arg4: memref<32x128xf32, #tpu.memory_space<vmem>>, %arg5: memref<32x128xf32, #tpu.memory_space<vmem>>, %arg6: memref<1x128xf32, #tpu.memory_space<vmem>>, %arg7: memref<1x128xf32, #tpu.memory_space<vmem>>, %arg8: memref<32x1xf32, #tpu.memory_space<vmem>>, %arg9: memref<1x1xf32, #tpu.memory_space<vmem>>, %arg10: memref<8x8x1xf32, #tpu.memory_space<vmem>>, %arg11: memref<8x8x32xf32, #tpu.memory_space<vmem>>, %arg12: memref<8x8x128xf32, #tpu.memory_space<vmem>>) attributes {dimension_semantics = [#tpu.dimension_semantics<parallel>], iteration_bounds = array<i64: 1>, scalar_prefetch = 0 : i64, scratch_operands = 2 : i64, tpu.core_type = #tpu.core_type<tc>, window_params = [{transform_indices = @transform_0, window_bounds = array<i64: 8, 8, 4>}, {pipeline_mode = #tpu.pipeline_mode<synchronous>, transform_indices = @transform_1, window_bounds = array<i64: 4, 128>}, {pipeline_mode = #tpu.pipeline_mode<synchronous>, transform_indices = @transform_2, window_bounds = array<i64: 32, 128>}, {pipeline_mode = #tpu.pipeline_mode<synchronous>, transform_indices = @transform_3, window_bounds = array<i64: 32, 128>}, {pipeline_mode = #tpu.pipeline_mode<synchronous>, transform_indices = @transform_4, window_bounds = array<i64: 32, 128>}, {pipeline_mode = #tpu.pipeline_mode<synchronous>, transform_indices = @transform_5, window_bounds = array<i64: 1, 128>}, {pipeline_mode = #tpu.pipeline_mode<synchronous>, transform_indices = @transform_6, window_bounds = array<i64: 1, 128>}, {pipeline_mode = #tpu.pipeline_mode<synchronous>, transform_indices = @transform_7, window_bounds = array<i64: 32, 1>}, {pipeline_mode = #tpu.pipeline_mode<synchronous>, transform_indices = @transform_8, window_bounds = array<i64: 1, 1>}, {transform_indices = @transform_9, window_bounds = array<i64: 8, 8, 1>}]} {
    %c0 = arith.constant 0 : index
    %c0_0 = arith.constant 0 : index
    %c0_1 = arith.constant 0 : index
    %0 = vector.load %arg1[%c0, %c0_0, %c0_1] : memref<8x8x4xf32, #tpu.memory_space<vmem>>, vector<8x8x4xf32>
    %1 = vector.shape_cast %0 : vector<8x8x4xf32> to vector<64x4xf32>
    %c0_2 = arith.constant 0 : index
    %c0_3 = arith.constant 0 : index
    %2 = vector.load %arg2[%c0_2, %c0_3] : memref<4x128xf32, #tpu.memory_space<vmem>>, vector<4x128xf32>
    %cst = arith.constant dense<0.000000e+00> : vector<64x128xf32>
    %3 = tpu.matmul %1, %2, %cst {dimension_numbers = #tpu.dot_dimension_numbers<[1], [0], [0], [1], [0, 0, 1, 1], [], []>} : vector<64x4xf32>, vector<4x128xf32>, vector<64x128xf32> -> vector<64x128xf32>
    %c0_4 = arith.constant 0 : index
    %c0_5 = arith.constant 0 : index
    %4 = vector.load %arg6[%c0_4, %c0_5] : memref<1x128xf32, #tpu.memory_space<vmem>>, vector<1x128xf32>
    %5 = vector.broadcast %4 : vector<1x128xf32> to vector<64x128xf32>
    %6 = arith.addf %3, %5 : vector<64x128xf32>
    %7 = vector.shape_cast %6 : vector<64x128xf32> to vector<8x8x128xf32>
    %c0_6 = arith.constant 0 : index
    %c0_7 = arith.constant 0 : index
    %c0_8 = arith.constant 0 : index
    %8 = vector.load %arg12[%c0_6, %c0_7, %c0_8] : memref<8x8x128xf32, #tpu.memory_space<vmem>>, vector<8x8x128xf32>
    tpu.vector_store %arg12[%c0_6, %c0_7, %c0_8], %7 {strides = array<i32>} : memref<8x8x128xf32, #tpu.memory_space<vmem>>, vector<8x8x128xf32>,
    %c0_9 = arith.constant 0 : index
    %c0_10 = arith.constant 0 : index
    %9 = vector.load %arg4[%c0_9, %c0_10] : memref<32x128xf32, #tpu.memory_space<vmem>>, vector<32x128xf32>
    %cst_11 = arith.constant 0.000000e+00 : f32
    %10 = vector.broadcast %cst_11 : f32 to vector<8x32xf32>
    %c0_i32 = arith.constant 0 : i32
    %11 = arith.index_cast %c0_i32 : i32 to index
    %c0_12 = arith.constant 0 : index
    %c0_13 = arith.constant 0 : index
    %12 = vector.load %arg12[%11, %c0_12, %c0_13] : memref<8x8x128xf32, #tpu.memory_space<vmem>>, vector<1x8x128xf32>
    %13 = vector.shape_cast %12 : vector<1x8x128xf32> to vector<8x128xf32>
    %cst_14 = arith.constant dense<0.000000e+00> : vector<8x128xf32>
    %14 = tpu.matmul %10, %9, %cst_14 {dimension_numbers = #tpu.dot_dimension_numbers<[1], [0], [0], [1], [0, 0, 1, 1], [], []>} : vector<8x32xf32>, vector<32x128xf32>, vector<8x128xf32> -> vector<8x128xf32>
    %15 = arith.addf %13, %14 : vector<8x128xf32>
    %16 = arith.negf %15 : vector<8x128xf32>
    %17 = math.exp %16 : vector<8x128xf32>
    %cst_15 = arith.constant 1.000000e+00 : f32
    %18 = vector.broadcast %cst_15 : f32 to vector<8x128xf32>
    %19 = arith.addf %18, %17 : vector<8x128xf32>
    %20 = arith.divf %18, %19 : vector<8x128xf32>
    %21 = math.tanh %15 : vector<8x128xf32>
    %22 = vector.extract_strided_slice %20 {offsets = [0, 0], sizes = [8, 32], strides = [1, 1]} : vector<8x128xf32> to vector<8x32xf32>
    %23 = vector.extract_strided_slice %20 {offsets = [0, 32], sizes = [8, 32], strides = [1, 1]} : vector<8x128xf32> to vector<8x32xf32>
    %24 = vector.extract_strided_slice %21 {offsets = [0, 64], sizes = [8, 32], strides = [1, 1]} : vector<8x128xf32> to vector<8x32xf32>
    %25 = vector.extract_strided_slice %20 {offsets = [0, 96], sizes = [8, 32], strides = [1, 1]} : vector<8x128xf32> to vector<8x32xf32>
    %26 = arith.mulf %23, %10 : vector<8x32xf32>
    %27 = arith.mulf %22, %24 : vector<8x32xf32>
    %28 = arith.addf %26, %27 : vector<8x32xf32>
    %29 = math.tanh %28 : vector<8x32xf32>
    %30 = arith.mulf %25, %29 : vector<8x32xf32>
    %31 = arith.index_cast %c0_i32 : i32 to index
    %c0_16 = arith.constant 0 : index
    %c0_17 = arith.constant 0 : index
    %32 = vector.load %arg11[%31, %c0_16, %c0_17] : memref<8x8x32xf32, #tpu.memory_space<vmem>>, vector<1x8x32xf32>
    %33 = vector.shape_cast %32 : vector<1x8x32xf32> to vector<8x32xf32>
    %34 = vector.shape_cast %30 : vector<8x32xf32> to vector<1x8x32xf32>
    tpu.vector_store %arg11[%31, %c0_16, %c0_17], %34 {strides = array<i32>} : memref<8x8x32xf32, #tpu.memory_space<vmem>>, vector<1x8x32xf32>,
    %c1_i32 = arith.constant 1 : i32
    %35 = arith.index_cast %c1_i32 : i32 to index
    %c0_18 = arith.constant 0 : index
    %c0_19 = arith.constant 0 : index
    %36 = vector.load %arg12[%35, %c0_18, %c0_19] : memref<8x8x128xf32, #tpu.memory_space<vmem>>, vector<1x8x128xf32>
    %37 = vector.shape_cast %36 : vector<1x8x128xf32> to vector<8x128xf32>
    %cst_20 = arith.constant dense<0.000000e+00> : vector<8x128xf32>
    %38 = tpu.matmul %30, %9, %cst_20 {dimension_numbers = #tpu.dot_dimension_numbers<[1], [0], [0], [1], [0, 0, 1, 1], [], []>} : vector<8x32xf32>, vector<32x128xf32>, vector<8x128xf32> -> vector<8x128xf32>
    %39 = arith.addf %37, %38 : vector<8x128xf32>
    %40 = arith.negf %39 : vector<8x128xf32>
    %41 = math.exp %40 : vector<8x128xf32>
    %cst_21 = arith.constant 1.000000e+00 : f32
    %42 = vector.broadcast %cst_21 : f32 to vector<8x128xf32>
    %43 = arith.addf %42, %41 : vector<8x128xf32>
    %44 = arith.divf %42, %43 : vector<8x128xf32>
    %45 = math.tanh %39 : vector<8x128xf32>
    %46 = vector.extract_strided_slice %44 {offsets = [0, 0], sizes = [8, 32], strides = [1, 1]} : vector<8x128xf32> to vector<8x32xf32>
    %47 = vector.extract_strided_slice %44 {offsets = [0, 32], sizes = [8, 32], strides = [1, 1]} : vector<8x128xf32> to vector<8x32xf32>
    %48 = vector.extract_strided_slice %45 {offsets = [0, 64], sizes = [8, 32], strides = [1, 1]} : vector<8x128xf32> to vector<8x32xf32>
    %49 = vector.extract_strided_slice %44 {offsets = [0, 96], sizes = [8, 32], strides = [1, 1]} : vector<8x128xf32> to vector<8x32xf32>
    %50 = arith.mulf %47, %28 : vector<8x32xf32>
    %51 = arith.mulf %46, %48 : vector<8x32xf32>
    %52 = arith.addf %50, %51 : vector<8x32xf32>
    %53 = math.tanh %52 : vector<8x32xf32>
    %54 = arith.mulf %49, %53 : vector<8x32xf32>
    %55 = arith.index_cast %c1_i32 : i32 to index
    %c0_22 = arith.constant 0 : index
    %c0_23 = arith.constant 0 : index
    %56 = vector.load %arg11[%55, %c0_22, %c0_23] : memref<8x8x32xf32, #tpu.memory_space<vmem>>, vector<1x8x32xf32>
    %57 = vector.shape_cast %56 : vector<1x8x32xf32> to vector<8x32xf32>
    %58 = vector.shape_cast %54 : vector<8x32xf32> to vector<1x8x32xf32>
    tpu.vector_store %arg11[%55, %c0_22, %c0_23], %58 {strides = array<i32>} : memref<8x8x32xf32, #tpu.memory_space<vmem>>, vector<1x8x32xf32>,
    %c2_i32 = arith.constant 2 : i32
    %59 = arith.index_cast %c2_i32 : i32 to index
    %c0_24 = arith.constant 0 : index
    %c0_25 = arith.constant 0 : index
    %60 = vector.load %arg12[%59, %c0_24, %c0_25] : memref<8x8x128xf32, #tpu.memory_space<vmem>>, vector<1x8x128xf32>
    %61 = vector.shape_cast %60 : vector<1x8x128xf32> to vector<8x128xf32>
    %cst_26 = arith.constant dense<0.000000e+00> : vector<8x128xf32>
    %62 = tpu.matmul %54, %9, %cst_26 {dimension_numbers = #tpu.dot_dimension_numbers<[1], [0], [0], [1], [0, 0, 1, 1], [], []>} : vector<8x32xf32>, vector<32x128xf32>, vector<8x128xf32> -> vector<8x128xf32>
    %63 = arith.addf %61, %62 : vector<8x128xf32>
    %64 = arith.negf %63 : vector<8x128xf32>
    %65 = math.exp %64 : vector<8x128xf32>
    %cst_27 = arith.constant 1.000000e+00 : f32
    %66 = vector.broadcast %cst_27 : f32 to vector<8x128xf32>
    %67 = arith.addf %66, %65 : vector<8x128xf32>
    %68 = arith.divf %66, %67 : vector<8x128xf32>
    %69 = math.tanh %63 : vector<8x128xf32>
    %70 = vector.extract_strided_slice %68 {offsets = [0, 0], sizes = [8, 32], strides = [1, 1]} : vector<8x128xf32> to vector<8x32xf32>
    %71 = vector.extract_strided_slice %68 {offsets = [0, 32], sizes = [8, 32], strides = [1, 1]} : vector<8x128xf32> to vector<8x32xf32>
    %72 = vector.extract_strided_slice %69 {offsets = [0, 64], sizes = [8, 32], strides = [1, 1]} : vector<8x128xf32> to vector<8x32xf32>
    %73 = vector.extract_strided_slice %68 {offsets = [0, 96], sizes = [8, 32], strides = [1, 1]} : vector<8x128xf32> to vector<8x32xf32>
    %74 = arith.mulf %71, %52 : vector<8x32xf32>
    %75 = arith.mulf %70, %72 : vector<8x32xf32>
    %76 = arith.addf %74, %75 : vector<8x32xf32>
    %77 = math.tanh %76 : vector<8x32xf32>
    %78 = arith.mulf %73, %77 : vector<8x32xf32>
    %79 = arith.index_cast %c2_i32 : i32 to index
    %c0_28 = arith.constant 0 : index
    %c0_29 = arith.constant 0 : index
    %80 = vector.load %arg11[%79, %c0_28, %c0_29] : memref<8x8x32xf32, #tpu.memory_space<vmem>>, vector<1x8x32xf32>
    %81 = vector.shape_cast %80 : vector<1x8x32xf32> to vector<8x32xf32>
    %82 = vector.shape_cast %78 : vector<8x32xf32> to vector<1x8x32xf32>
    tpu.vector_store %arg11[%79, %c0_28, %c0_29], %82 {strides = array<i32>} : memref<8x8x32xf32, #tpu.memory_space<vmem>>, vector<1x8x32xf32>,
    %c3_i32 = arith.constant 3 : i32
    %83 = arith.index_cast %c3_i32 : i32 to index
    %c0_30 = arith.constant 0 : index
    %c0_31 = arith.constant 0 : index
    %84 = vector.load %arg12[%83, %c0_30, %c0_31] : memref<8x8x128xf32, #tpu.memory_space<vmem>>, vector<1x8x128xf32>
    %85 = vector.shape_cast %84 : vector<1x8x128xf32> to vector<8x128xf32>
    %cst_32 = arith.constant dense<0.000000e+00> : vector<8x128xf32>
    %86 = tpu.matmul %78, %9, %cst_32 {dimension_numbers = #tpu.dot_dimension_numbers<[1], [0], [0], [1], [0, 0, 1, 1], [], []>} : vector<8x32xf32>, vector<32x128xf32>, vector<8x128xf32> -> vector<8x128xf32>
    %87 = arith.addf %85, %86 : vector<8x128xf32>
    %88 = arith.negf %87 : vector<8x128xf32>
    %89 = math.exp %88 : vector<8x128xf32>
    %cst_33 = arith.constant 1.000000e+00 : f32
    %90 = vector.broadcast %cst_33 : f32 to vector<8x128xf32>
    %91 = arith.addf %90, %89 : vector<8x128xf32>
    %92 = arith.divf %90, %91 : vector<8x128xf32>
    %93 = math.tanh %87 : vector<8x128xf32>
    %94 = vector.extract_strided_slice %92 {offsets = [0, 0], sizes = [8, 32], strides = [1, 1]} : vector<8x128xf32> to vector<8x32xf32>
    %95 = vector.extract_strided_slice %92 {offsets = [0, 32], sizes = [8, 32], strides = [1, 1]} : vector<8x128xf32> to vector<8x32xf32>
    %96 = vector.extract_strided_slice %93 {offsets = [0, 64], sizes = [8, 32], strides = [1, 1]} : vector<8x128xf32> to vector<8x32xf32>
    %97 = vector.extract_strided_slice %92 {offsets = [0, 96], sizes = [8, 32], strides = [1, 1]} : vector<8x128xf32> to vector<8x32xf32>
    %98 = arith.mulf %95, %76 : vector<8x32xf32>
    %99 = arith.mulf %94, %96 : vector<8x32xf32>
    %100 = arith.addf %98, %99 : vector<8x32xf32>
    %101 = math.tanh %100 : vector<8x32xf32>
    %102 = arith.mulf %97, %101 : vector<8x32xf32>
    %103 = arith.index_cast %c3_i32 : i32 to index
    %c0_34 = arith.constant 0 : index
    %c0_35 = arith.constant 0 : index
    %104 = vector.load %arg11[%103, %c0_34, %c0_35] : memref<8x8x32xf32, #tpu.memory_space<vmem>>, vector<1x8x32xf32>
    %105 = vector.shape_cast %104 : vector<1x8x32xf32> to vector<8x32xf32>
    %106 = vector.shape_cast %102 : vector<8x32xf32> to vector<1x8x32xf32>
    tpu.vector_store %arg11[%103, %c0_34, %c0_35], %106 {strides = array<i32>} : memref<8x8x32xf32, #tpu.memory_space<vmem>>, vector<1x8x32xf32>,
    %c4_i32 = arith.constant 4 : i32
    %107 = arith.index_cast %c4_i32 : i32 to index
    %c0_36 = arith.constant 0 : index
    %c0_37 = arith.constant 0 : index
    %108 = vector.load %arg12[%107, %c0_36, %c0_37] : memref<8x8x128xf32, #tpu.memory_space<vmem>>, vector<1x8x128xf32>
    %109 = vector.shape_cast %108 : vector<1x8x128xf32> to vector<8x128xf32>
    %cst_38 = arith.constant dense<0.000000e+00> : vector<8x128xf32>
    %110 = tpu.matmul %102, %9, %cst_38 {dimension_numbers = #tpu.dot_dimension_numbers<[1], [0], [0], [1], [0, 0, 1, 1], [], []>} : vector<8x32xf32>, vector<32x128xf32>, vector<8x128xf32> -> vector<8x128xf32>
    %111 = arith.addf %109, %110 : vector<8x128xf32>
    %112 = arith.negf %111 : vector<8x128xf32>
    %113 = math.exp %112 : vector<8x128xf32>
    %cst_39 = arith.constant 1.000000e+00 : f32
    %114 = vector.broadcast %cst_39 : f32 to vector<8x128xf32>
    %115 = arith.addf %114, %113 : vector<8x128xf32>
    %116 = arith.divf %114, %115 : vector<8x128xf32>
    %117 = math.tanh %111 : vector<8x128xf32>
    %118 = vector.extract_strided_slice %116 {offsets = [0, 0], sizes = [8, 32], strides = [1, 1]} : vector<8x128xf32> to vector<8x32xf32>
    %119 = vector.extract_strided_slice %116 {offsets = [0, 32], sizes = [8, 32], strides = [1, 1]} : vector<8x128xf32> to vector<8x32xf32>
    %120 = vector.extract_strided_slice %117 {offsets = [0, 64], sizes = [8, 32], strides = [1, 1]} : vector<8x128xf32> to vector<8x32xf32>
    %121 = vector.extract_strided_slice %116 {offsets = [0, 96], sizes = [8, 32], strides = [1, 1]} : vector<8x128xf32> to vector<8x32xf32>
    %122 = arith.mulf %119, %100 : vector<8x32xf32>
    %123 = arith.mulf %118, %120 : vector<8x32xf32>
    %124 = arith.addf %122, %123 : vector<8x32xf32>
    %125 = math.tanh %124 : vector<8x32xf32>
    %126 = arith.mulf %121, %125 : vector<8x32xf32>
    %127 = arith.index_cast %c4_i32 : i32 to index
    %c0_40 = arith.constant 0 : index
    %c0_41 = arith.constant 0 : index
    %128 = vector.load %arg11[%127, %c0_40, %c0_41] : memref<8x8x32xf32, #tpu.memory_space<vmem>>, vector<1x8x32xf32>
    %129 = vector.shape_cast %128 : vector<1x8x32xf32> to vector<8x32xf32>
    %130 = vector.shape_cast %126 : vector<8x32xf32> to vector<1x8x32xf32>
    tpu.vector_store %arg11[%127, %c0_40, %c0_41], %130 {strides = array<i32>} : memref<8x8x32xf32, #tpu.memory_space<vmem>>, vector<1x8x32xf32>,
    %c5_i32 = arith.constant 5 : i32
    %131 = arith.index_cast %c5_i32 : i32 to index
    %c0_42 = arith.constant 0 : index
    %c0_43 = arith.constant 0 : index
    %132 = vector.load %arg12[%131, %c0_42, %c0_43] : memref<8x8x128xf32, #tpu.memory_space<vmem>>, vector<1x8x128xf32>
    %133 = vector.shape_cast %132 : vector<1x8x128xf32> to vector<8x128xf32>
    %cst_44 = arith.constant dense<0.000000e+00> : vector<8x128xf32>
    %134 = tpu.matmul %126, %9, %cst_44 {dimension_numbers = #tpu.dot_dimension_numbers<[1], [0], [0], [1], [0, 0, 1, 1], [], []>} : vector<8x32xf32>, vector<32x128xf32>, vector<8x128xf32> -> vector<8x128xf32>
    %135 = arith.addf %133, %134 : vector<8x128xf32>
    %136 = arith.negf %135 : vector<8x128xf32>
    %137 = math.exp %136 : vector<8x128xf32>
    %cst_45 = arith.constant 1.000000e+00 : f32
    %138 = vector.broadcast %cst_45 : f32 to vector<8x128xf32>
    %139 = arith.addf %138, %137 : vector<8x128xf32>
    %140 = arith.divf %138, %139 : vector<8x128xf32>
    %141 = math.tanh %135 : vector<8x128xf32>
    %142 = vector.extract_strided_slice %140 {offsets = [0, 0], sizes = [8, 32], strides = [1, 1]} : vector<8x128xf32> to vector<8x32xf32>
    %143 = vector.extract_strided_slice %140 {offsets = [0, 32], sizes = [8, 32], strides = [1, 1]} : vector<8x128xf32> to vector<8x32xf32>
    %144 = vector.extract_strided_slice %141 {offsets = [0, 64], sizes = [8, 32], strides = [1, 1]} : vector<8x128xf32> to vector<8x32xf32>
    %145 = vector.extract_strided_slice %140 {offsets = [0, 96], sizes = [8, 32], strides = [1, 1]} : vector<8x128xf32> to vector<8x32xf32>
    %146 = arith.mulf %143, %124 : vector<8x32xf32>
    %147 = arith.mulf %142, %144 : vector<8x32xf32>
    %148 = arith.addf %146, %147 : vector<8x32xf32>
    %149 = math.tanh %148 : vector<8x32xf32>
    %150 = arith.mulf %145, %149 : vector<8x32xf32>
    %151 = arith.index_cast %c5_i32 : i32 to index
    %c0_46 = arith.constant 0 : index
    %c0_47 = arith.constant 0 : index
    %152 = vector.load %arg11[%151, %c0_46, %c0_47] : memref<8x8x32xf32, #tpu.memory_space<vmem>>, vector<1x8x32xf32>
    %153 = vector.shape_cast %152 : vector<1x8x32xf32> to vector<8x32xf32>
    %154 = vector.shape_cast %150 : vector<8x32xf32> to vector<1x8x32xf32>
    tpu.vector_store %arg11[%151, %c0_46, %c0_47], %154 {strides = array<i32>} : memref<8x8x32xf32, #tpu.memory_space<vmem>>, vector<1x8x32xf32>,
    %c6_i32 = arith.constant 6 : i32
    %155 = arith.index_cast %c6_i32 : i32 to index
    %c0_48 = arith.constant 0 : index
    %c0_49 = arith.constant 0 : index
    %156 = vector.load %arg12[%155, %c0_48, %c0_49] : memref<8x8x128xf32, #tpu.memory_space<vmem>>, vector<1x8x128xf32>
    %157 = vector.shape_cast %156 : vector<1x8x128xf32> to vector<8x128xf32>
    %cst_50 = arith.constant dense<0.000000e+00> : vector<8x128xf32>
    %158 = tpu.matmul %150, %9, %cst_50 {dimension_numbers = #tpu.dot_dimension_numbers<[1], [0], [0], [1], [0, 0, 1, 1], [], []>} : vector<8x32xf32>, vector<32x128xf32>, vector<8x128xf32> -> vector<8x128xf32>
    %159 = arith.addf %157, %158 : vector<8x128xf32>
    %160 = arith.negf %159 : vector<8x128xf32>
    %161 = math.exp %160 : vector<8x128xf32>
    %cst_51 = arith.constant 1.000000e+00 : f32
    %162 = vector.broadcast %cst_51 : f32 to vector<8x128xf32>
    %163 = arith.addf %162, %161 : vector<8x128xf32>
    %164 = arith.divf %162, %163 : vector<8x128xf32>
    %165 = math.tanh %159 : vector<8x128xf32>
    %166 = vector.extract_strided_slice %164 {offsets = [0, 0], sizes = [8, 32], strides = [1, 1]} : vector<8x128xf32> to vector<8x32xf32>
    %167 = vector.extract_strided_slice %164 {offsets = [0, 32], sizes = [8, 32], strides = [1, 1]} : vector<8x128xf32> to vector<8x32xf32>
    %168 = vector.extract_strided_slice %165 {offsets = [0, 64], sizes = [8, 32], strides = [1, 1]} : vector<8x128xf32> to vector<8x32xf32>
    %169 = vector.extract_strided_slice %164 {offsets = [0, 96], sizes = [8, 32], strides = [1, 1]} : vector<8x128xf32> to vector<8x32xf32>
    %170 = arith.mulf %167, %148 : vector<8x32xf32>
    %171 = arith.mulf %166, %168 : vector<8x32xf32>
    %172 = arith.addf %170, %171 : vector<8x32xf32>
    %173 = math.tanh %172 : vector<8x32xf32>
    %174 = arith.mulf %169, %173 : vector<8x32xf32>
    %175 = arith.index_cast %c6_i32 : i32 to index
    %c0_52 = arith.constant 0 : index
    %c0_53 = arith.constant 0 : index
    %176 = vector.load %arg11[%175, %c0_52, %c0_53] : memref<8x8x32xf32, #tpu.memory_space<vmem>>, vector<1x8x32xf32>
    %177 = vector.shape_cast %176 : vector<1x8x32xf32> to vector<8x32xf32>
    %178 = vector.shape_cast %174 : vector<8x32xf32> to vector<1x8x32xf32>
    tpu.vector_store %arg11[%175, %c0_52, %c0_53], %178 {strides = array<i32>} : memref<8x8x32xf32, #tpu.memory_space<vmem>>, vector<1x8x32xf32>,
    %c7_i32 = arith.constant 7 : i32
    %179 = arith.index_cast %c7_i32 : i32 to index
    %c0_54 = arith.constant 0 : index
    %c0_55 = arith.constant 0 : index
    %180 = vector.load %arg12[%179, %c0_54, %c0_55] : memref<8x8x128xf32, #tpu.memory_space<vmem>>, vector<1x8x128xf32>
    %181 = vector.shape_cast %180 : vector<1x8x128xf32> to vector<8x128xf32>
    %cst_56 = arith.constant dense<0.000000e+00> : vector<8x128xf32>
    %182 = tpu.matmul %174, %9, %cst_56 {dimension_numbers = #tpu.dot_dimension_numbers<[1], [0], [0], [1], [0, 0, 1, 1], [], []>} : vector<8x32xf32>, vector<32x128xf32>, vector<8x128xf32> -> vector<8x128xf32>
    %183 = arith.addf %181, %182 : vector<8x128xf32>
    %184 = arith.negf %183 : vector<8x128xf32>
    %185 = math.exp %184 : vector<8x128xf32>
    %cst_57 = arith.constant 1.000000e+00 : f32
    %186 = vector.broadcast %cst_57 : f32 to vector<8x128xf32>
    %187 = arith.addf %186, %185 : vector<8x128xf32>
    %188 = arith.divf %186, %187 : vector<8x128xf32>
    %189 = math.tanh %183 : vector<8x128xf32>
    %190 = vector.extract_strided_slice %188 {offsets = [0, 0], sizes = [8, 32], strides = [1, 1]} : vector<8x128xf32> to vector<8x32xf32>
    %191 = vector.extract_strided_slice %188 {offsets = [0, 32], sizes = [8, 32], strides = [1, 1]} : vector<8x128xf32> to vector<8x32xf32>
    %192 = vector.extract_strided_slice %189 {offsets = [0, 64], sizes = [8, 32], strides = [1, 1]} : vector<8x128xf32> to vector<8x32xf32>
    %193 = vector.extract_strided_slice %188 {offsets = [0, 96], sizes = [8, 32], strides = [1, 1]} : vector<8x128xf32> to vector<8x32xf32>
    %194 = arith.mulf %191, %172 : vector<8x32xf32>
    %195 = arith.mulf %190, %192 : vector<8x32xf32>
    %196 = arith.addf %194, %195 : vector<8x32xf32>
    %197 = math.tanh %196 : vector<8x32xf32>
    %198 = arith.mulf %193, %197 : vector<8x32xf32>
    %199 = arith.index_cast %c7_i32 : i32 to index
    %c0_58 = arith.constant 0 : index
    %c0_59 = arith.constant 0 : index
    %200 = vector.load %arg11[%199, %c0_58, %c0_59] : memref<8x8x32xf32, #tpu.memory_space<vmem>>, vector<1x8x32xf32>
    %201 = vector.shape_cast %200 : vector<1x8x32xf32> to vector<8x32xf32>
    %202 = vector.shape_cast %198 : vector<8x32xf32> to vector<1x8x32xf32>
    tpu.vector_store %arg11[%199, %c0_58, %c0_59], %202 {strides = array<i32>} : memref<8x8x32xf32, #tpu.memory_space<vmem>>, vector<1x8x32xf32>,
    %c8_i32 = arith.constant 8 : i32
    %c0_60 = arith.constant 0 : index
    %c0_61 = arith.constant 0 : index
    %c0_62 = arith.constant 0 : index
    %203 = vector.load %arg11[%c0_60, %c0_61, %c0_62] : memref<8x8x32xf32, #tpu.memory_space<vmem>>, vector<8x8x32xf32>
    %204 = vector.shape_cast %203 : vector<8x8x32xf32> to vector<64x32xf32>
    %c0_63 = arith.constant 0 : index
    %c0_64 = arith.constant 0 : index
    %205 = vector.load %arg3[%c0_63, %c0_64] : memref<32x128xf32, #tpu.memory_space<vmem>>, vector<32x128xf32>
    %cst_65 = arith.constant dense<0.000000e+00> : vector<64x128xf32>
    %206 = tpu.matmul %204, %205, %cst_65 {dimension_numbers = #tpu.dot_dimension_numbers<[1], [0], [0], [1], [0, 0, 1, 1], [], []>} : vector<64x32xf32>, vector<32x128xf32>, vector<64x128xf32> -> vector<64x128xf32>
    %c0_66 = arith.constant 0 : index
    %c0_67 = arith.constant 0 : index
    %207 = vector.load %arg7[%c0_66, %c0_67] : memref<1x128xf32, #tpu.memory_space<vmem>>, vector<1x128xf32>
    %208 = vector.broadcast %207 : vector<1x128xf32> to vector<64x128xf32>
    %209 = arith.addf %206, %208 : vector<64x128xf32>
    %210 = vector.shape_cast %209 : vector<64x128xf32> to vector<8x8x128xf32>
    %c0_68 = arith.constant 0 : index
    %c0_69 = arith.constant 0 : index
    %c0_70 = arith.constant 0 : index
    %211 = vector.load %arg12[%c0_68, %c0_69, %c0_70] : memref<8x8x128xf32, #tpu.memory_space<vmem>>, vector<8x8x128xf32>
    tpu.vector_store %arg12[%c0_68, %c0_69, %c0_70], %210 {strides = array<i32>} : memref<8x8x128xf32, #tpu.memory_space<vmem>>, vector<8x8x128xf32>,
    %c0_71 = arith.constant 0 : index
    %c0_72 = arith.constant 0 : index
    %212 = vector.load %arg5[%c0_71, %c0_72] : memref<32x128xf32, #tpu.memory_space<vmem>>, vector<32x128xf32>
    %cst_73 = arith.constant 0.000000e+00 : f32
    %213 = vector.broadcast %cst_73 : f32 to vector<8x32xf32>
    %c0_i32_74 = arith.constant 0 : i32
    %214 = arith.index_cast %c0_i32_74 : i32 to index
    %c0_75 = arith.constant 0 : index
    %c0_76 = arith.constant 0 : index
    %215 = vector.load %arg12[%214, %c0_75, %c0_76] : memref<8x8x128xf32, #tpu.memory_space<vmem>>, vector<1x8x128xf32>
    %216 = vector.shape_cast %215 : vector<1x8x128xf32> to vector<8x128xf32>
    %cst_77 = arith.constant dense<0.000000e+00> : vector<8x128xf32>
    %217 = tpu.matmul %213, %212, %cst_77 {dimension_numbers = #tpu.dot_dimension_numbers<[1], [0], [0], [1], [0, 0, 1, 1], [], []>} : vector<8x32xf32>, vector<32x128xf32>, vector<8x128xf32> -> vector<8x128xf32>
    %218 = arith.addf %216, %217 : vector<8x128xf32>
    %219 = arith.negf %218 : vector<8x128xf32>
    %220 = math.exp %219 : vector<8x128xf32>
    %cst_78 = arith.constant 1.000000e+00 : f32
    %221 = vector.broadcast %cst_78 : f32 to vector<8x128xf32>
    %222 = arith.addf %221, %220 : vector<8x128xf32>
    %223 = arith.divf %221, %222 : vector<8x128xf32>
    %224 = math.tanh %218 : vector<8x128xf32>
    %225 = vector.extract_strided_slice %223 {offsets = [0, 0], sizes = [8, 32], strides = [1, 1]} : vector<8x128xf32> to vector<8x32xf32>
    %226 = vector.extract_strided_slice %223 {offsets = [0, 32], sizes = [8, 32], strides = [1, 1]} : vector<8x128xf32> to vector<8x32xf32>
    %227 = vector.extract_strided_slice %224 {offsets = [0, 64], sizes = [8, 32], strides = [1, 1]} : vector<8x128xf32> to vector<8x32xf32>
    %228 = vector.extract_strided_slice %223 {offsets = [0, 96], sizes = [8, 32], strides = [1, 1]} : vector<8x128xf32> to vector<8x32xf32>
    %229 = arith.mulf %226, %213 : vector<8x32xf32>
    %230 = arith.mulf %225, %227 : vector<8x32xf32>
    %231 = arith.addf %229, %230 : vector<8x32xf32>
    %232 = math.tanh %231 : vector<8x32xf32>
    %233 = arith.mulf %228, %232 : vector<8x32xf32>
    %234 = arith.index_cast %c0_i32_74 : i32 to index
    %c0_79 = arith.constant 0 : index
    %c0_80 = arith.constant 0 : index
    %235 = vector.load %arg11[%234, %c0_79, %c0_80] : memref<8x8x32xf32, #tpu.memory_space<vmem>>, vector<1x8x32xf32>
    %236 = vector.shape_cast %235 : vector<1x8x32xf32> to vector<8x32xf32>
    %237 = vector.shape_cast %233 : vector<8x32xf32> to vector<1x8x32xf32>
    tpu.vector_store %arg11[%234, %c0_79, %c0_80], %237 {strides = array<i32>} : memref<8x8x32xf32, #tpu.memory_space<vmem>>, vector<1x8x32xf32>,
    %c1_i32_81 = arith.constant 1 : i32
    %238 = arith.index_cast %c1_i32_81 : i32 to index
    %c0_82 = arith.constant 0 : index
    %c0_83 = arith.constant 0 : index
    %239 = vector.load %arg12[%238, %c0_82, %c0_83] : memref<8x8x128xf32, #tpu.memory_space<vmem>>, vector<1x8x128xf32>
    %240 = vector.shape_cast %239 : vector<1x8x128xf32> to vector<8x128xf32>
    %cst_84 = arith.constant dense<0.000000e+00> : vector<8x128xf32>
    %241 = tpu.matmul %233, %212, %cst_84 {dimension_numbers = #tpu.dot_dimension_numbers<[1], [0], [0], [1], [0, 0, 1, 1], [], []>} : vector<8x32xf32>, vector<32x128xf32>, vector<8x128xf32> -> vector<8x128xf32>
    %242 = arith.addf %240, %241 : vector<8x128xf32>
    %243 = arith.negf %242 : vector<8x128xf32>
    %244 = math.exp %243 : vector<8x128xf32>
    %cst_85 = arith.constant 1.000000e+00 : f32
    %245 = vector.broadcast %cst_85 : f32 to vector<8x128xf32>
    %246 = arith.addf %245, %244 : vector<8x128xf32>
    %247 = arith.divf %245, %246 : vector<8x128xf32>
    %248 = math.tanh %242 : vector<8x128xf32>
    %249 = vector.extract_strided_slice %247 {offsets = [0, 0], sizes = [8, 32], strides = [1, 1]} : vector<8x128xf32> to vector<8x32xf32>
    %250 = vector.extract_strided_slice %247 {offsets = [0, 32], sizes = [8, 32], strides = [1, 1]} : vector<8x128xf32> to vector<8x32xf32>
    %251 = vector.extract_strided_slice %248 {offsets = [0, 64], sizes = [8, 32], strides = [1, 1]} : vector<8x128xf32> to vector<8x32xf32>
    %252 = vector.extract_strided_slice %247 {offsets = [0, 96], sizes = [8, 32], strides = [1, 1]} : vector<8x128xf32> to vector<8x32xf32>
    %253 = arith.mulf %250, %231 : vector<8x32xf32>
    %254 = arith.mulf %249, %251 : vector<8x32xf32>
    %255 = arith.addf %253, %254 : vector<8x32xf32>
    %256 = math.tanh %255 : vector<8x32xf32>
    %257 = arith.mulf %252, %256 : vector<8x32xf32>
    %258 = arith.index_cast %c1_i32_81 : i32 to index
    %c0_86 = arith.constant 0 : index
    %c0_87 = arith.constant 0 : index
    %259 = vector.load %arg11[%258, %c0_86, %c0_87] : memref<8x8x32xf32, #tpu.memory_space<vmem>>, vector<1x8x32xf32>
    %260 = vector.shape_cast %259 : vector<1x8x32xf32> to vector<8x32xf32>
    %261 = vector.shape_cast %257 : vector<8x32xf32> to vector<1x8x32xf32>
    tpu.vector_store %arg11[%258, %c0_86, %c0_87], %261 {strides = array<i32>} : memref<8x8x32xf32, #tpu.memory_space<vmem>>, vector<1x8x32xf32>,
    %c2_i32_88 = arith.constant 2 : i32
    %262 = arith.index_cast %c2_i32_88 : i32 to index
    %c0_89 = arith.constant 0 : index
    %c0_90 = arith.constant 0 : index
    %263 = vector.load %arg12[%262, %c0_89, %c0_90] : memref<8x8x128xf32, #tpu.memory_space<vmem>>, vector<1x8x128xf32>
    %264 = vector.shape_cast %263 : vector<1x8x128xf32> to vector<8x128xf32>
    %cst_91 = arith.constant dense<0.000000e+00> : vector<8x128xf32>
    %265 = tpu.matmul %257, %212, %cst_91 {dimension_numbers = #tpu.dot_dimension_numbers<[1], [0], [0], [1], [0, 0, 1, 1], [], []>} : vector<8x32xf32>, vector<32x128xf32>, vector<8x128xf32> -> vector<8x128xf32>
    %266 = arith.addf %264, %265 : vector<8x128xf32>
    %267 = arith.negf %266 : vector<8x128xf32>
    %268 = math.exp %267 : vector<8x128xf32>
    %cst_92 = arith.constant 1.000000e+00 : f32
    %269 = vector.broadcast %cst_92 : f32 to vector<8x128xf32>
    %270 = arith.addf %269, %268 : vector<8x128xf32>
    %271 = arith.divf %269, %270 : vector<8x128xf32>
    %272 = math.tanh %266 : vector<8x128xf32>
    %273 = vector.extract_strided_slice %271 {offsets = [0, 0], sizes = [8, 32], strides = [1, 1]} : vector<8x128xf32> to vector<8x32xf32>
    %274 = vector.extract_strided_slice %271 {offsets = [0, 32], sizes = [8, 32], strides = [1, 1]} : vector<8x128xf32> to vector<8x32xf32>
    %275 = vector.extract_strided_slice %272 {offsets = [0, 64], sizes = [8, 32], strides = [1, 1]} : vector<8x128xf32> to vector<8x32xf32>
    %276 = vector.extract_strided_slice %271 {offsets = [0, 96], sizes = [8, 32], strides = [1, 1]} : vector<8x128xf32> to vector<8x32xf32>
    %277 = arith.mulf %274, %255 : vector<8x32xf32>
    %278 = arith.mulf %273, %275 : vector<8x32xf32>
    %279 = arith.addf %277, %278 : vector<8x32xf32>
    %280 = math.tanh %279 : vector<8x32xf32>
    %281 = arith.mulf %276, %280 : vector<8x32xf32>
    %282 = arith.index_cast %c2_i32_88 : i32 to index
    %c0_93 = arith.constant 0 : index
    %c0_94 = arith.constant 0 : index
    %283 = vector.load %arg11[%282, %c0_93, %c0_94] : memref<8x8x32xf32, #tpu.memory_space<vmem>>, vector<1x8x32xf32>
    %284 = vector.shape_cast %283 : vector<1x8x32xf32> to vector<8x32xf32>
    %285 = vector.shape_cast %281 : vector<8x32xf32> to vector<1x8x32xf32>
    tpu.vector_store %arg11[%282, %c0_93, %c0_94], %285 {strides = array<i32>} : memref<8x8x32xf32, #tpu.memory_space<vmem>>, vector<1x8x32xf32>,
    %c3_i32_95 = arith.constant 3 : i32
    %286 = arith.index_cast %c3_i32_95 : i32 to index
    %c0_96 = arith.constant 0 : index
    %c0_97 = arith.constant 0 : index
    %287 = vector.load %arg12[%286, %c0_96, %c0_97] : memref<8x8x128xf32, #tpu.memory_space<vmem>>, vector<1x8x128xf32>
    %288 = vector.shape_cast %287 : vector<1x8x128xf32> to vector<8x128xf32>
    %cst_98 = arith.constant dense<0.000000e+00> : vector<8x128xf32>
    %289 = tpu.matmul %281, %212, %cst_98 {dimension_numbers = #tpu.dot_dimension_numbers<[1], [0], [0], [1], [0, 0, 1, 1], [], []>} : vector<8x32xf32>, vector<32x128xf32>, vector<8x128xf32> -> vector<8x128xf32>
    %290 = arith.addf %288, %289 : vector<8x128xf32>
    %291 = arith.negf %290 : vector<8x128xf32>
    %292 = math.exp %291 : vector<8x128xf32>
    %cst_99 = arith.constant 1.000000e+00 : f32
    %293 = vector.broadcast %cst_99 : f32 to vector<8x128xf32>
    %294 = arith.addf %293, %292 : vector<8x128xf32>
    %295 = arith.divf %293, %294 : vector<8x128xf32>
    %296 = math.tanh %290 : vector<8x128xf32>
    %297 = vector.extract_strided_slice %295 {offsets = [0, 0], sizes = [8, 32], strides = [1, 1]} : vector<8x128xf32> to vector<8x32xf32>
    %298 = vector.extract_strided_slice %295 {offsets = [0, 32], sizes = [8, 32], strides = [1, 1]} : vector<8x128xf32> to vector<8x32xf32>
    %299 = vector.extract_strided_slice %296 {offsets = [0, 64], sizes = [8, 32], strides = [1, 1]} : vector<8x128xf32> to vector<8x32xf32>
    %300 = vector.extract_strided_slice %295 {offsets = [0, 96], sizes = [8, 32], strides = [1, 1]} : vector<8x128xf32> to vector<8x32xf32>
    %301 = arith.mulf %298, %279 : vector<8x32xf32>
    %302 = arith.mulf %297, %299 : vector<8x32xf32>
    %303 = arith.addf %301, %302 : vector<8x32xf32>
    %304 = math.tanh %303 : vector<8x32xf32>
    %305 = arith.mulf %300, %304 : vector<8x32xf32>
    %306 = arith.index_cast %c3_i32_95 : i32 to index
    %c0_100 = arith.constant 0 : index
    %c0_101 = arith.constant 0 : index
    %307 = vector.load %arg11[%306, %c0_100, %c0_101] : memref<8x8x32xf32, #tpu.memory_space<vmem>>, vector<1x8x32xf32>
    %308 = vector.shape_cast %307 : vector<1x8x32xf32> to vector<8x32xf32>
    %309 = vector.shape_cast %305 : vector<8x32xf32> to vector<1x8x32xf32>
    tpu.vector_store %arg11[%306, %c0_100, %c0_101], %309 {strides = array<i32>} : memref<8x8x32xf32, #tpu.memory_space<vmem>>, vector<1x8x32xf32>,
    %c4_i32_102 = arith.constant 4 : i32
    %310 = arith.index_cast %c4_i32_102 : i32 to index
    %c0_103 = arith.constant 0 : index
    %c0_104 = arith.constant 0 : index
    %311 = vector.load %arg12[%310, %c0_103, %c0_104] : memref<8x8x128xf32, #tpu.memory_space<vmem>>, vector<1x8x128xf32>
    %312 = vector.shape_cast %311 : vector<1x8x128xf32> to vector<8x128xf32>
    %cst_105 = arith.constant dense<0.000000e+00> : vector<8x128xf32>
    %313 = tpu.matmul %305, %212, %cst_105 {dimension_numbers = #tpu.dot_dimension_numbers<[1], [0], [0], [1], [0, 0, 1, 1], [], []>} : vector<8x32xf32>, vector<32x128xf32>, vector<8x128xf32> -> vector<8x128xf32>
    %314 = arith.addf %312, %313 : vector<8x128xf32>
    %315 = arith.negf %314 : vector<8x128xf32>
    %316 = math.exp %315 : vector<8x128xf32>
    %cst_106 = arith.constant 1.000000e+00 : f32
    %317 = vector.broadcast %cst_106 : f32 to vector<8x128xf32>
    %318 = arith.addf %317, %316 : vector<8x128xf32>
    %319 = arith.divf %317, %318 : vector<8x128xf32>
    %320 = math.tanh %314 : vector<8x128xf32>
    %321 = vector.extract_strided_slice %319 {offsets = [0, 0], sizes = [8, 32], strides = [1, 1]} : vector<8x128xf32> to vector<8x32xf32>
    %322 = vector.extract_strided_slice %319 {offsets = [0, 32], sizes = [8, 32], strides = [1, 1]} : vector<8x128xf32> to vector<8x32xf32>
    %323 = vector.extract_strided_slice %320 {offsets = [0, 64], sizes = [8, 32], strides = [1, 1]} : vector<8x128xf32> to vector<8x32xf32>
    %324 = vector.extract_strided_slice %319 {offsets = [0, 96], sizes = [8, 32], strides = [1, 1]} : vector<8x128xf32> to vector<8x32xf32>
    %325 = arith.mulf %322, %303 : vector<8x32xf32>
    %326 = arith.mulf %321, %323 : vector<8x32xf32>
    %327 = arith.addf %325, %326 : vector<8x32xf32>
    %328 = math.tanh %327 : vector<8x32xf32>
    %329 = arith.mulf %324, %328 : vector<8x32xf32>
    %330 = arith.index_cast %c4_i32_102 : i32 to index
    %c0_107 = arith.constant 0 : index
    %c0_108 = arith.constant 0 : index
    %331 = vector.load %arg11[%330, %c0_107, %c0_108] : memref<8x8x32xf32, #tpu.memory_space<vmem>>, vector<1x8x32xf32>
    %332 = vector.shape_cast %331 : vector<1x8x32xf32> to vector<8x32xf32>
    %333 = vector.shape_cast %329 : vector<8x32xf32> to vector<1x8x32xf32>
    tpu.vector_store %arg11[%330, %c0_107, %c0_108], %333 {strides = array<i32>} : memref<8x8x32xf32, #tpu.memory_space<vmem>>, vector<1x8x32xf32>,
    %c5_i32_109 = arith.constant 5 : i32
    %334 = arith.index_cast %c5_i32_109 : i32 to index
    %c0_110 = arith.constant 0 : index
    %c0_111 = arith.constant 0 : index
    %335 = vector.load %arg12[%334, %c0_110, %c0_111] : memref<8x8x128xf32, #tpu.memory_space<vmem>>, vector<1x8x128xf32>
    %336 = vector.shape_cast %335 : vector<1x8x128xf32> to vector<8x128xf32>
    %cst_112 = arith.constant dense<0.000000e+00> : vector<8x128xf32>
    %337 = tpu.matmul %329, %212, %cst_112 {dimension_numbers = #tpu.dot_dimension_numbers<[1], [0], [0], [1], [0, 0, 1, 1], [], []>} : vector<8x32xf32>, vector<32x128xf32>, vector<8x128xf32> -> vector<8x128xf32>
    %338 = arith.addf %336, %337 : vector<8x128xf32>
    %339 = arith.negf %338 : vector<8x128xf32>
    %340 = math.exp %339 : vector<8x128xf32>
    %cst_113 = arith.constant 1.000000e+00 : f32
    %341 = vector.broadcast %cst_113 : f32 to vector<8x128xf32>
    %342 = arith.addf %341, %340 : vector<8x128xf32>
    %343 = arith.divf %341, %342 : vector<8x128xf32>
    %344 = math.tanh %338 : vector<8x128xf32>
    %345 = vector.extract_strided_slice %343 {offsets = [0, 0], sizes = [8, 32], strides = [1, 1]} : vector<8x128xf32> to vector<8x32xf32>
    %346 = vector.extract_strided_slice %343 {offsets = [0, 32], sizes = [8, 32], strides = [1, 1]} : vector<8x128xf32> to vector<8x32xf32>
    %347 = vector.extract_strided_slice %344 {offsets = [0, 64], sizes = [8, 32], strides = [1, 1]} : vector<8x128xf32> to vector<8x32xf32>
    %348 = vector.extract_strided_slice %343 {offsets = [0, 96], sizes = [8, 32], strides = [1, 1]} : vector<8x128xf32> to vector<8x32xf32>
    %349 = arith.mulf %346, %327 : vector<8x32xf32>
    %350 = arith.mulf %345, %347 : vector<8x32xf32>
    %351 = arith.addf %349, %350 : vector<8x32xf32>
    %352 = math.tanh %351 : vector<8x32xf32>
    %353 = arith.mulf %348, %352 : vector<8x32xf32>
    %354 = arith.index_cast %c5_i32_109 : i32 to index
    %c0_114 = arith.constant 0 : index
    %c0_115 = arith.constant 0 : index
    %355 = vector.load %arg11[%354, %c0_114, %c0_115] : memref<8x8x32xf32, #tpu.memory_space<vmem>>, vector<1x8x32xf32>
    %356 = vector.shape_cast %355 : vector<1x8x32xf32> to vector<8x32xf32>
    %357 = vector.shape_cast %353 : vector<8x32xf32> to vector<1x8x32xf32>
    tpu.vector_store %arg11[%354, %c0_114, %c0_115], %357 {strides = array<i32>} : memref<8x8x32xf32, #tpu.memory_space<vmem>>, vector<1x8x32xf32>,
    %c6_i32_116 = arith.constant 6 : i32
    %358 = arith.index_cast %c6_i32_116 : i32 to index
    %c0_117 = arith.constant 0 : index
    %c0_118 = arith.constant 0 : index
    %359 = vector.load %arg12[%358, %c0_117, %c0_118] : memref<8x8x128xf32, #tpu.memory_space<vmem>>, vector<1x8x128xf32>
    %360 = vector.shape_cast %359 : vector<1x8x128xf32> to vector<8x128xf32>
    %cst_119 = arith.constant dense<0.000000e+00> : vector<8x128xf32>
    %361 = tpu.matmul %353, %212, %cst_119 {dimension_numbers = #tpu.dot_dimension_numbers<[1], [0], [0], [1], [0, 0, 1, 1], [], []>} : vector<8x32xf32>, vector<32x128xf32>, vector<8x128xf32> -> vector<8x128xf32>
    %362 = arith.addf %360, %361 : vector<8x128xf32>
    %363 = arith.negf %362 : vector<8x128xf32>
    %364 = math.exp %363 : vector<8x128xf32>
    %cst_120 = arith.constant 1.000000e+00 : f32
    %365 = vector.broadcast %cst_120 : f32 to vector<8x128xf32>
    %366 = arith.addf %365, %364 : vector<8x128xf32>
    %367 = arith.divf %365, %366 : vector<8x128xf32>
    %368 = math.tanh %362 : vector<8x128xf32>
    %369 = vector.extract_strided_slice %367 {offsets = [0, 0], sizes = [8, 32], strides = [1, 1]} : vector<8x128xf32> to vector<8x32xf32>
    %370 = vector.extract_strided_slice %367 {offsets = [0, 32], sizes = [8, 32], strides = [1, 1]} : vector<8x128xf32> to vector<8x32xf32>
    %371 = vector.extract_strided_slice %368 {offsets = [0, 64], sizes = [8, 32], strides = [1, 1]} : vector<8x128xf32> to vector<8x32xf32>
    %372 = vector.extract_strided_slice %367 {offsets = [0, 96], sizes = [8, 32], strides = [1, 1]} : vector<8x128xf32> to vector<8x32xf32>
    %373 = arith.mulf %370, %351 : vector<8x32xf32>
    %374 = arith.mulf %369, %371 : vector<8x32xf32>
    %375 = arith.addf %373, %374 : vector<8x32xf32>
    %376 = math.tanh %375 : vector<8x32xf32>
    %377 = arith.mulf %372, %376 : vector<8x32xf32>
    %378 = arith.index_cast %c6_i32_116 : i32 to index
    %c0_121 = arith.constant 0 : index
    %c0_122 = arith.constant 0 : index
    %379 = vector.load %arg11[%378, %c0_121, %c0_122] : memref<8x8x32xf32, #tpu.memory_space<vmem>>, vector<1x8x32xf32>
    %380 = vector.shape_cast %379 : vector<1x8x32xf32> to vector<8x32xf32>
    %381 = vector.shape_cast %377 : vector<8x32xf32> to vector<1x8x32xf32>
    tpu.vector_store %arg11[%378, %c0_121, %c0_122], %381 {strides = array<i32>} : memref<8x8x32xf32, #tpu.memory_space<vmem>>, vector<1x8x32xf32>,
    %c7_i32_123 = arith.constant 7 : i32
    %382 = arith.index_cast %c7_i32_123 : i32 to index
    %c0_124 = arith.constant 0 : index
    %c0_125 = arith.constant 0 : index
    %383 = vector.load %arg12[%382, %c0_124, %c0_125] : memref<8x8x128xf32, #tpu.memory_space<vmem>>, vector<1x8x128xf32>
    %384 = vector.shape_cast %383 : vector<1x8x128xf32> to vector<8x128xf32>
    %cst_126 = arith.constant dense<0.000000e+00> : vector<8x128xf32>
    %385 = tpu.matmul %377, %212, %cst_126 {dimension_numbers = #tpu.dot_dimension_numbers<[1], [0], [0], [1], [0, 0, 1, 1], [], []>} : vector<8x32xf32>, vector<32x128xf32>, vector<8x128xf32> -> vector<8x128xf32>
    %386 = arith.addf %384, %385 : vector<8x128xf32>
    %387 = arith.negf %386 : vector<8x128xf32>
    %388 = math.exp %387 : vector<8x128xf32>
    %cst_127 = arith.constant 1.000000e+00 : f32
    %389 = vector.broadcast %cst_127 : f32 to vector<8x128xf32>
    %390 = arith.addf %389, %388 : vector<8x128xf32>
    %391 = arith.divf %389, %390 : vector<8x128xf32>
    %392 = math.tanh %386 : vector<8x128xf32>
    %393 = vector.extract_strided_slice %391 {offsets = [0, 0], sizes = [8, 32], strides = [1, 1]} : vector<8x128xf32> to vector<8x32xf32>
    %394 = vector.extract_strided_slice %391 {offsets = [0, 32], sizes = [8, 32], strides = [1, 1]} : vector<8x128xf32> to vector<8x32xf32>
    %395 = vector.extract_strided_slice %392 {offsets = [0, 64], sizes = [8, 32], strides = [1, 1]} : vector<8x128xf32> to vector<8x32xf32>
    %396 = vector.extract_strided_slice %391 {offsets = [0, 96], sizes = [8, 32], strides = [1, 1]} : vector<8x128xf32> to vector<8x32xf32>
    %397 = arith.mulf %394, %375 : vector<8x32xf32>
    %398 = arith.mulf %393, %395 : vector<8x32xf32>
    %399 = arith.addf %397, %398 : vector<8x32xf32>
    %400 = math.tanh %399 : vector<8x32xf32>
    %401 = arith.mulf %396, %400 : vector<8x32xf32>
    %402 = arith.index_cast %c7_i32_123 : i32 to index
    %c0_128 = arith.constant 0 : index
    %c0_129 = arith.constant 0 : index
    %403 = vector.load %arg11[%402, %c0_128, %c0_129] : memref<8x8x32xf32, #tpu.memory_space<vmem>>, vector<1x8x32xf32>
    %404 = vector.shape_cast %403 : vector<1x8x32xf32> to vector<8x32xf32>
    %405 = vector.shape_cast %401 : vector<8x32xf32> to vector<1x8x32xf32>
    tpu.vector_store %arg11[%402, %c0_128, %c0_129], %405 {strides = array<i32>} : memref<8x8x32xf32, #tpu.memory_space<vmem>>, vector<1x8x32xf32>,
    %c8_i32_130 = arith.constant 8 : i32
    %c0_131 = arith.constant 0 : index
    %c0_132 = arith.constant 0 : index
    %406 = vector.load %arg8[%c0_131, %c0_132] : memref<32x1xf32, #tpu.memory_space<vmem>>, vector<32x1xf32>
    %c0_133 = arith.constant 0 : index
    %c0_134 = arith.constant 0 : index
    %407 = vector.load %arg9[%c0_133, %c0_134] : memref<1x1xf32, #tpu.memory_space<vmem>>, vector<1x1xf32>
    %c0_135 = arith.constant 0 : index
    %c0_136 = arith.constant 0 : index
    %c0_137 = arith.constant 0 : index
    %408 = vector.load %arg11[%c0_135, %c0_136, %c0_137] : memref<8x8x32xf32, #tpu.memory_space<vmem>>, vector<8x8x32xf32>
    %409 = vector.shape_cast %408 : vector<8x8x32xf32> to vector<64x32xf32>
    %cst_138 = arith.constant dense<0.000000e+00> : vector<64x1xf32>
    %410 = tpu.matmul %409, %406, %cst_138 {dimension_numbers = #tpu.dot_dimension_numbers<[1], [0], [0], [1], [0, 0, 1, 1], [], []>} : vector<64x32xf32>, vector<32x1xf32>, vector<64x1xf32> -> vector<64x1xf32>
    %411 = vector.broadcast %407 : vector<1x1xf32> to vector<64x1xf32>
    %412 = arith.addf %410, %411 : vector<64x1xf32>
    %413 = vector.shape_cast %412 : vector<64x1xf32> to vector<8x8x1xf32>
    %c0_139 = arith.constant 0 : index
    %c0_140 = arith.constant 0 : index
    %c0_141 = arith.constant 0 : index
    %414 = vector.load %arg10[%c0_139, %c0_140, %c0_141] : memref<8x8x1xf32, #tpu.memory_space<vmem>>, vector<8x8x1xf32>
    tpu.vector_store %arg10[%c0_139, %c0_140, %c0_141], %413 {strides = array<i32>} : memref<8x8x1xf32, #tpu.memory_space<vmem>>, vector<8x8x1xf32>,
    return
  }
  func.func @transform_0(%arg0: i32) -> (i32, i32, i32) {
    %c0_i32 = arith.constant 0 : i32
    %c0_i32_0 = arith.constant 0 : i32
    %c0_i32_1 = arith.constant 0 : i32
    return %c0_i32, %arg0, %c0_i32_0 : i32, i32, i32
  }
  func.func @transform_1(%arg0: i32) -> (i32, i32) {
    %c0_i32 = arith.constant 0 : i32
    %c0_i32_0 = arith.constant 0 : i32
    %c0_i32_1 = arith.constant 0 : i32
    return %c0_i32, %c0_i32_0 : i32, i32
  }
  func.func @transform_2(%arg0: i32) -> (i32, i32) {
    %c0_i32 = arith.constant 0 : i32
    %c0_i32_0 = arith.constant 0 : i32
    %c0_i32_1 = arith.constant 0 : i32
    return %c0_i32, %c0_i32_0 : i32, i32
  }
  func.func @transform_3(%arg0: i32) -> (i32, i32) {
    %c0_i32 = arith.constant 0 : i32
    %c0_i32_0 = arith.constant 0 : i32
    %c0_i32_1 = arith.constant 0 : i32
    return %c0_i32, %c0_i32_0 : i32, i32
  }
  func.func @transform_4(%arg0: i32) -> (i32, i32) {
    %c0_i32 = arith.constant 0 : i32
    %c0_i32_0 = arith.constant 0 : i32
    %c0_i32_1 = arith.constant 0 : i32
    return %c0_i32, %c0_i32_0 : i32, i32
  }
  func.func @transform_5(%arg0: i32) -> (i32, i32) {
    %c0_i32 = arith.constant 0 : i32
    %c0_i32_0 = arith.constant 0 : i32
    %c0_i32_1 = arith.constant 0 : i32
    return %c0_i32, %c0_i32_0 : i32, i32
  }
  func.func @transform_6(%arg0: i32) -> (i32, i32) {
    %c0_i32 = arith.constant 0 : i32
    %c0_i32_0 = arith.constant 0 : i32
    %c0_i32_1 = arith.constant 0 : i32
    return %c0_i32, %c0_i32_0 : i32, i32
  }
  func.func @transform_7(%arg0: i32) -> (i32, i32) {
    %c0_i32 = arith.constant 0 : i32
    %c0_i32_0 = arith.constant 0 : i32
    %c0_i32_1 = arith.constant 0 : i32
    return %c0_i32, %c0_i32_0 : i32, i32
  }
  func.func @transform_8(%arg0: i32) -> (i32, i32) {
    %c0_i32 = arith.constant 0 : i32
    %c0_i32_0 = arith.constant 0 : i32
    %c0_i32_1 = arith.constant 0 : i32
    return %c0_i32, %c0_i32_0 : i32, i32
  }
  func.func @transform_9(%arg0: i32) -> (i32, i32, i32) {
    %c0_i32 = arith.constant 0 : i32
    %c0_i32_0 = arith.constant 0 : i32
    %c0_i32_1 = arith.constant 0 : i32
    return %c0_i32, %arg0, %c0_i32_0 : i32, i32, i32
  }
}

</mosaic_0001>

<llo_original>
// kernel: model_forward.1
$region0: #{model_forward.1}
  #allocation0 [shape = 'u32[]', space=smem, size = 0x4, offset = 0x4, fixed_abs, tag = 'smem constant byte address 0x4 - core index']
  #allocation1 [shape = 'u32[72,128]{1,0:T(1,128)}', space=vmem, size = 0x9000, scoped, tag = 'internal scratch']
  #allocation2 [shape = 'f32[8,8,32]{2,1,0:T(8,128)}', space=vmem, size = 0x8000, scoped, tag = 'scratch operand']
  #allocation3 [shape = 'f32[8,8,128]{2,1,0:T(8,128)}', space=vmem, size = 0x8000, scoped, tag = 'scratch operand']
  #allocation4 [shape = 'f32[1,1]{1,0:T(1,128)S(1)}', space=vmem, size = 0x200, scoped, tag = 'scoped memory for model_forward.1']
  %s0 = inlined_call_operand.vmem [shape: f32[8,8,4], index: 0, kind: input, shape index: {}]
  %s1 = inlined_call_operand.vmem [shape: f32[4,128], index: 1, kind: input, shape index: {}]
  %s2 = inlined_call_operand.vmem [shape: f32[32,128], index: 2, kind: input, shape index: {}]
  %s3 = inlined_call_operand.vmem [shape: f32[32,128], index: 3, kind: input, shape index: {}]
  %s4 = inlined_call_operand.vmem [shape: f32[32,128], index: 4, kind: input, shape index: {}]
  %s5 = inlined_call_operand.vmem [shape: f32[1,128], index: 5, kind: input, shape index: {}]
  %s6 = inlined_call_operand.vmem [shape: f32[1,128], index: 6, kind: input, shape index: {}]
  %s7 = inlined_call_operand.vmem [shape: f32[32,1], index: 7, kind: input, shape index: {}]
  %s8 = inlined_call_operand.<no memory space> [shape: f32[1,1], index: 8, kind: input, shape index: {}]
  %s9 = inlined_call_operand.vmem [shape: f32[8,8,1], index: 9, kind: output, shape index: {}]
  %s10 = sld [smem:[#allocation0]]
  $region46: #{model_forward.1} parent=0
    _
  %s12 = ssub.s32 1, %s10
  %s13 = scalar_select 0, %s12, %s10
  %v14 = vstv %s8
  %15 = vst [vmem:[#allocation4] sm:$0x1] %v14
  // Predicated region
  $region2: #{model_forward.1} parent=0 // pred_check
    _
  $region3: #{model_forward.1} parent=0 // pred_check_branch
    %17 = sbr.rel (0) target = $region5
  $region4: #{model_forward.1} parent=0 // pred_region
    _
  $region5: #{model_forward.1} parent=0 // pred_fallthru
    _
  // Predicated region
  $region6: #{model_forward.1} parent=0 // pred_check
    _
  $region7: #{model_forward.1} parent=0 // pred_check_branch
    %19 = sbr.rel (0) target = $region9
  $region8: #{model_forward.1} parent=0 // pred_region
    _
  $region9: #{model_forward.1} parent=0 // pred_fallthru
    _
  // Predicated region
  $region10: #{model_forward.1} parent=0 // pred_check
    _
  $region11: #{model_forward.1} parent=0 // pred_check_branch
    %21 = sbr.rel (0) target = $region13
  $region12: #{model_forward.1} parent=0 // pred_region
    _
  $region13: #{model_forward.1} parent=0 // pred_fallthru
    _
  // Predicated region
  $region14: #{model_forward.1} parent=0 // pred_check
    _
  $region15: #{model_forward.1} parent=0 // pred_check_branch
    %23 = sbr.rel (0) target = $region17
  $region16: #{model_forward.1} parent=0 // pred_region
    _
  $region17: #{model_forward.1} parent=0 // pred_fallthru
    _
  // Predicated region
  $region18: #{model_forward.1} parent=0 // pred_check
    _
  $region19: #{model_forward.1} parent=0 // pred_check_branch
    %25 = sbr.rel (0) target = $region21
  $region20: #{model_forward.1} parent=0 // pred_region
    _
  $region21: #{model_forward.1} parent=0 // pred_fallthru
    _
  // Predicated region
  $region22: #{model_forward.1} parent=0 // pred_check
    _
  $region23: #{model_forward.1} parent=0 // pred_check_branch
    %27 = sbr.rel (0) target = $region25
  $region24: #{model_forward.1} parent=0 // pred_region
    _
  $region25: #{model_forward.1} parent=0 // pred_fallthru
    _
  // Predicated region
  $region26: #{model_forward.1} parent=0 // pred_check
    _
  $region27: #{model_forward.1} parent=0 // pred_check_branch
    %29 = sbr.rel (0) target = $region29
  $region28: #{model_forward.1} parent=0 // pred_region
    _
  $region29: #{model_forward.1} parent=0 // pred_fallthru
    _
  // Predicated region
  $region30: #{model_forward.1} parent=0 // pred_check
    _
  $region31: #{model_forward.1} parent=0 // pred_check_branch
    %31 = sbr.rel (0) target = $region33
  $region32: #{model_forward.1} parent=0 // pred_region
    _
  $region33: #{model_forward.1} parent=0 // pred_fallthru
    _
  // Predicated region
  $region34: #{model_forward.1} parent=0 // pred_check
    _
  $region35: #{model_forward.1} parent=0 // pred_check_branch
    %33 = sbr.rel (0) target = $region37
  $region36: #{model_forward.1} parent=0 // pred_region
    _
  $region37: #{model_forward.1} parent=0 // pred_fallthru
    _
  %v34 = vld [vmem:[%s0] sm:$0xff]
  %v35 = vld [vmem:[%s0 + $0x8] sm:$0xff]
  %v36 = vld [vmem:[%s0 + $0x10] sm:$0xff]
  %v37 = vld [vmem:[%s0 + $0x18] sm:$0xff]
  %v38 = vld [vmem:[%s0 + $0x20] sm:$0xff]
  %v39 = vld [vmem:[%s0 + $0x28] sm:$0xff]
  %v40 = vld [vmem:[%s0 + $0x30] sm:$0xff]
  %v41 = vld [vmem:[%s0 + $0x38] sm:$0xff]
  %v42 = vld [vmem:[%s1] sm:$0xf]
  %v43 = vld [vmem:[%s5] sm:$0x1]
  %v45 = vperm.slane %v43, 0
  %vm47 = vcmask 31744
  %v49 = vsel %vm47, %v34, 0
  %v52 = vsel %vm47, %v35, 0
  %v55 = vsel %vm47, %v36, 0
  %v58 = vsel %vm47, %v37, 0
  %v61 = vsel %vm47, %v38, 0
  %v64 = vsel %vm47, %v39, 0
  %v67 = vsel %vm47, %v40, 0
  %v70 = vsel %vm47, %v41, 0
  %vm72 = vcmask 1043456
  %v74 = vsel %vm72, %v42, 0
  %76 = vmatpush.msra.mxu0 0.0
  %77 = vmatpush.msra.mxu0 0.0
  %78 = vmatpush.msra.mxu0 0.0
  %79 = vmatpush.msra.mxu0 0.0
  %80 = vmatpush.msra.mxu0 0.0
  %81 = vmatpush.msra.mxu0 0.0
  %82 = vmatpush.msra.mxu0 0.0
  %83 = vmatpush.msra.mxu0 0.0
  %84 = vmatpush.msra.mxu0 0.0
  %85 = vmatpush.msra.mxu0 0.0
  %86 = vmatpush.msra.mxu0 0.0
  %87 = vmatpush.msra.mxu0 0.0
  %88 = vmatpush.msra.mxu0 0.0
  %89 = vmatpush.msra.mxu0 0.0
  %90 = vmatpush.msra.mxu0 0.0
  %91 = vmatpush.msra.mxu0 %v74
  %92 = vmatmul.f32.gmra.mxu0 %v49
  %v93 = vpop.f32.mrf.mxu0
  %v94 = vadd.f32 %v45, %v93
  %95 = vmatmul.f32.gmra.mxu0 %v52
  %v96 = vpop.f32.mrf.mxu0
  %v97 = vadd.f32 %v45, %v96
  %98 = vmatmul.f32.gmra.mxu0 %v55
  %v99 = vpop.f32.mrf.mxu0
  %v100 = vadd.f32 %v45, %v99
  %101 = vmatmul.f32.gmra.mxu0 %v58
  %v102 = vpop.f32.mrf.mxu0
  %v103 = vadd.f32 %v45, %v102
  %104 = vmatmul.f32.gmra.mxu0 %v61
  %v105 = vpop.f32.mrf.mxu0
  %v106 = vadd.f32 %v45, %v105
  %107 = vmatmul.f32.gmra.mxu0 %v64
  %v108 = vpop.f32.mrf.mxu0
  %v109 = vadd.f32 %v45, %v108
  %110 = vmatmul.f32.gmra.mxu0 %v67
  %v111 = vpop.f32.mrf.mxu0
  %v112 = vadd.f32 %v45, %v111
  %113 = vmatmul.f32.gmra.mxu0 %v70
  %v114 = vpop.f32.mrf.mxu0
  %v115 = vadd.f32 %v45, %v114
  %116 = vdwg.mxu0
  %117 = vst [vmem:[#allocation3] sm:$0xff] %v94
  %118 = vst [vmem:[#allocation3 + $0x8] sm:$0xff] %v97
  %119 = vst [vmem:[#allocation3 + $0x10] sm:$0xff] %v100
  %120 = vst [vmem:[#allocation3 + $0x18] sm:$0xff] %v103
  %121 = vst [vmem:[#allocation3 + $0x20] sm:$0xff] %v106
  %122 = vst [vmem:[#allocation3 + $0x28] sm:$0xff] %v109
  %123 = vst [vmem:[#allocation3 + $0x30] sm:$0xff] %v112
  %124 = vst [vmem:[#allocation3 + $0x38] sm:$0xff] %v115
  %v125 = vld [vmem:[%s3] sm:$0xff]
  %v126 = vld [vmem:[%s3 + $0x8] sm:$0xff]
  %v127 = vld [vmem:[%s3 + $0x10] sm:$0xff]
  %v128 = vld [vmem:[%s3 + $0x18] sm:$0xff]
  %v129 = vld [vmem:[#allocation3] sm:$0xff]
  %vm130 = vcmask 261120
  %v132 = vsel %vm130, 0.0, 0
  %134 = vmatpush.msra.mxu0 0.0
  %135 = vmatpush.msra.mxu0 0.0
  %136 = vmatpush.msra.mxu0 0.0
  %137 = vmatpush.msra.mxu0 0.0
  %138 = vmatpush.msra.mxu0 0.0
  %139 = vmatpush.msra.mxu0 0.0
  %140 = vmatpush.msra.mxu0 0.0
  %141 = vmatpush.msra.mxu0 0.0
  %142 = vmatpush.msra.mxu0 0.0
  %143 = vmatpush.msra.mxu0 0.0
  %144 = vmatpush.msra.mxu0 0.0
  %145 = vmatpush.msra.mxu0 0.0
  %146 = vmatpush.msra.mxu0 %v128
  %147 = vmatpush.msra.mxu0 %v127
  %148 = vmatpush.msra.mxu0 %v126
  %149 = vmatpush.msra.mxu0 %v125
  %150 = vmatmul.f32.gmra.mxu0 %v132
  %v151 = vpop.f32.mrf.mxu0
  %v152 = vadd.f32 0.0, %v151
  %153 = vdwg.mxu0
  %v154 = vadd.f32 %v129, %v152
  %v155 = vxor.u32 %v154, 2147483648
  %v156 = vmul.f32 %v155, 1.442695
  %v157 = vpow.pop %v156
  %v158 = vadd.f32 %v157, 1.0
  %v159 = vrcp.pop %v158
  %v160 = vmul.f32 %v158, %v159
  %v161 = vsub.f32 1.0, %v160
  %v162 = vmul.f32 %v159, %v161
  %v163 = vadd.f32 %v159, %v162
  %vm164 = vweird.f32 %v158
  %vm165 = vweird.f32 %v159
  %vm166 = vmor %vm164, %vm165
  %v167 = vsel %vm166, %v159, %v163
  %v168 = vand.u32 2147483647, %v158
  %vm169 = vcmp.eq.f32.partialorder %v168, 8.507059e+37
  %v170 = vand.u32 %v158, 2147483648
  %v171 = vor.u32 1.1754944e-38, %v170
  %v172 = vsel %vm169, %v171, %v167
  %v173 = vmul.f32 1.0, %v172
  %v174 = vtanh.pop %v154
  %v175 = vmul.f32 %v173, 0.0
  %177 = vrot.lane.b32.xlu0 %v174, 64
  %v178 = vpop.permute.xlu0 %177
  %v180 = vmul.f32 %v173, %v178
  %182 = vrot.lane.b32.xlu0 %v180, 32
  %v183 = vpop.permute.xlu0 %182
  %v185 = vadd.f32 %v175, %v183
  %v186 = vtanh.pop %v185
  %188 = vrot.lane.b32.xlu0 %v186, 64
  %v189 = vpop.permute.xlu0 %188
  %v191 = vmul.f32 %v173, %v189
  %193 = vrot.lane.b32.xlu0 %v191, 32
  %v194 = vpop.permute.xlu0 %193
  %196 = vst.msk [vmem:[#allocation2] sm:$0xff] %vm130, %v194
  %s197 = scalar_lea.vmem [#allocation3], 8
  %v198 = vld [vmem:[%s197] sm:$0xff]
  %v199 = vsel %vm130, %v194, 0
  %201 = vmatpush.msra.mxu0 0.0
  %202 = vmatpush.msra.mxu0 0.0
  %203 = vmatpush.msra.mxu0 0.0
  %204 = vmatpush.msra.mxu0 0.0
  %205 = vmatpush.msra.mxu0 0.0
  %206 = vmatpush.msra.mxu0 0.0
  %207 = vmatpush.msra.mxu0 0.0
  %208 = vmatpush.msra.mxu0 0.0
  %209 = vmatpush.msra.mxu0 0.0
  %210 = vmatpush.msra.mxu0 0.0
  %211 = vmatpush.msra.mxu0 0.0
  %212 = vmatpush.msra.mxu0 0.0
  %213 = vmatpush.msra.mxu0 %v128
  %214 = vmatpush.msra.mxu0 %v127
  %215 = vmatpush.msra.mxu0 %v126
  %216 = vmatpush.msra.mxu0 %v125
  %217 = vmatmul.f32.gmra.mxu0 %v199
  %v218 = vpop.f32.mrf.mxu0
  %v219 = vadd.f32 0.0, %v218
  %220 = vdwg.mxu0
  %v221 = vadd.f32 %v198, %v219
  %v222 = vxor.u32 %v221, 2147483648
  %v223 = vmul.f32 %v222, 1.442695
  %v224 = vpow.pop %v223
  %v225 = vadd.f32 %v224, 1.0
  %v226 = vrcp.pop %v225
  %v227 = vmul.f32 %v225, %v226
  %v228 = vsub.f32 1.0, %v227
  %v229 = vmul.f32 %v226, %v228
  %v230 = vadd.f32 %v226, %v229
  %vm231 = vweird.f32 %v225
  %vm232 = vweird.f32 %v226
  %vm233 = vmor %vm231, %vm232
  %v234 = vsel %vm233, %v226, %v230
  %v235 = vand.u32 2147483647, %v225
  %vm236 = vcmp.eq.f32.partialorder %v235, 8.507059e+37
  %v237 = vand.u32 %v225, 2147483648
  %v238 = vor.u32 1.1754944e-38, %v237
  %v239 = vsel %vm236, %v238, %v234
  %v240 = vmul.f32 1.0, %v239
  %v241 = vtanh.pop %v221
  %v242 = vmul.f32 %v240, %v185
  %244 = vrot.lane.b32.xlu0 %v241, 64
  %v245 = vpop.permute.xlu0 %244
  %v247 = vmul.f32 %v240, %v245
  %249 = vrot.lane.b32.xlu0 %v247, 32
  %v250 = vpop.permute.xlu0 %249
  %v252 = vadd.f32 %v242, %v250
  %v253 = vtanh.pop %v252
  %255 = vrot.lane.b32.xlu0 %v253, 64
  %v256 = vpop.permute.xlu0 %255
  %v258 = vmul.f32 %v240, %v256
  %260 = vrot.lane.b32.xlu0 %v258, 32
  %v261 = vpop.permute.xlu0 %260
  %s263 = scalar_lea.vmem [#allocation2], 8
  %264 = vst.msk [vmem:[%s263] sm:$0xff] %vm130, %v261
  %s265 = scalar_lea.vmem [#allocation3], 16
  %v266 = vld [vmem:[%s265] sm:$0xff]
  %v267 = vsel %vm130, %v261, 0
  %269 = vmatpush.msra.mxu0 0.0
  %270 = vmatpush.msra.mxu0 0.0
  %271 = vmatpush.msra.mxu0 0.0
  %272 = vmatpush.msra.mxu0 0.0
  %273 = vmatpush.msra.mxu0 0.0
  %274 = vmatpush.msra.mxu0 0.0
  %275 = vmatpush.msra.mxu0 0.0
  %276 = vmatpush.msra.mxu0 0.0
  %277 = vmatpush.msra.mxu0 0.0
  %278 = vmatpush.msra.mxu0 0.0
  %279 = vmatpush.msra.mxu0 0.0
  %280 = vmatpush.msra.mxu0 0.0
  %281 = vmatpush.msra.mxu0 %v128
  %282 = vmatpush.msra.mxu0 %v127
  %283 = vmatpush.msra.mxu0 %v126
  %284 = vmatpush.msra.mxu0 %v125
  %285 = vmatmul.f32.gmra.mxu0 %v267
  %v286 = vpop.f32.mrf.mxu0
  %v287 = vadd.f32 0.0, %v286
  %288 = vdwg.mxu0
  %v289 = vadd.f32 %v266, %v287
  %v290 = vxor.u32 %v289, 2147483648
  %v291 = vmul.f32 %v290, 1.442695
  %v292 = vpow.pop %v291
  %v293 = vadd.f32 %v292, 1.0
  %v294 = vrcp.pop %v293
  %v295 = vmul.f32 %v293, %v294
  %v296 = vsub.f32 1.0, %v295
  %v297 = vmul.f32 %v294, %v296
  %v298 = vadd.f32 %v294, %v297
  %vm299 = vweird.f32 %v293
  %vm300 = vweird.f32 %v294
  %vm301 = vmor %vm299, %vm300
  %v302 = vsel %vm301, %v294, %v298
  %v303 = vand.u32 2147483647, %v293
  %vm304 = vcmp.eq.f32.partialorder %v303, 8.507059e+37
  %v305 = vand.u32 %v293, 2147483648
  %v306 = vor.u32 1.1754944e-38, %v305
  %v307 = vsel %vm304, %v306, %v302
  %v308 = vmul.f32 1.0, %v307
  %v309 = vtanh.pop %v289
  %v310 = vmul.f32 %v308, %v252
  %312 = vrot.lane.b32.xlu0 %v309, 64
  %v313 = vpop.permute.xlu0 %312
  %v315 = vmul.f32 %v308, %v313
  %317 = vrot.lane.b32.xlu0 %v315, 32
  %v318 = vpop.permute.xlu0 %317
  %v320 = vadd.f32 %v310, %v318
  %v321 = vtanh.pop %v320
  %323 = vrot.lane.b32.xlu0 %v321, 64
  %v324 = vpop.permute.xlu0 %323
  %v326 = vmul.f32 %v308, %v324
  %328 = vrot.lane.b32.xlu0 %v326, 32
  %v329 = vpop.permute.xlu0 %328
  %s331 = scalar_lea.vmem [#allocation2], 16
  %332 = vst.msk [vmem:[%s331] sm:$0xff] %vm130, %v329
  %s333 = scalar_lea.vmem [#allocation3], 24
  %v334 = vld [vmem:[%s333] sm:$0xff]
  %v335 = vsel %vm130, %v329, 0
  %337 = vmatpush.msra.mxu0 0.0
  %338 = vmatpush.msra.mxu0 0.0
  %339 = vmatpush.msra.mxu0 0.0
  %340 = vmatpush.msra.mxu0 0.0
  %341 = vmatpush.msra.mxu0 0.0
  %342 = vmatpush.msra.mxu0 0.0
  %343 = vmatpush.msra.mxu0 0.0
  %344 = vmatpush.msra.mxu0 0.0
  %345 = vmatpush.msra.mxu0 0.0
  %346 = vmatpush.msra.mxu0 0.0
  %347 = vmatpush.msra.mxu0 0.0
  %348 = vmatpush.msra.mxu0 0.0
  %349 = vmatpush.msra.mxu0 %v128
  %350 = vmatpush.msra.mxu0 %v127
  %351 = vmatpush.msra.mxu0 %v126
  %352 = vmatpush.msra.mxu0 %v125
  %353 = vmatmul.f32.gmra.mxu0 %v335
  %v354 = vpop.f32.mrf.mxu0
  %v355 = vadd.f32 0.0, %v354
  %356 = vdwg.mxu0
  %v357 = vadd.f32 %v334, %v355
  %v358 = vxor.u32 %v357, 2147483648
  %v359 = vmul.f32 %v358, 1.442695
  %v360 = vpow.pop %v359
  %v361 = vadd.f32 %v360, 1.0
  %v362 = vrcp.pop %v361
  %v363 = vmul.f32 %v361, %v362
  %v364 = vsub.f32 1.0, %v363
  %v365 = vmul.f32 %v362, %v364
  %v366 = vadd.f32 %v362, %v365
  %vm367 = vweird.f32 %v361
  %vm368 = vweird.f32 %v362
  %vm369 = vmor %vm367, %vm368
  %v370 = vsel %vm369, %v362, %v366
  %v371 = vand.u32 2147483647, %v361
  %vm372 = vcmp.eq.f32.partialorder %v371, 8.507059e+37
  %v373 = vand.u32 %v361, 2147483648
  %v374 = vor.u32 1.1754944e-38, %v373
  %v375 = vsel %vm372, %v374, %v370
  %v376 = vmul.f32 1.0, %v375
  %v377 = vtanh.pop %v357
  %v378 = vmul.f32 %v376, %v320
  %380 = vrot.lane.b32.xlu0 %v377, 64
  %v381 = vpop.permute.xlu0 %380
  %v383 = vmul.f32 %v376, %v381
  %385 = vrot.lane.b32.xlu0 %v383, 32
  %v386 = vpop.permute.xlu0 %385
  %v388 = vadd.f32 %v378, %v386
  %v389 = vtanh.pop %v388
  %391 = vrot.lane.b32.xlu0 %v389, 64
  %v392 = vpop.permute.xlu0 %391
  %v394 = vmul.f32 %v376, %v392
  %396 = vrot.lane.b32.xlu0 %v394, 32
  %v397 = vpop.permute.xlu0 %396
  %s399 = scalar_lea.vmem [#allocation2], 24
  %400 = vst.msk [vmem:[%s399] sm:$0xff] %vm130, %v397
  %s401 = scalar_lea.vmem [#allocation3], 32
  %v402 = vld [vmem:[%s401] sm:$0xff]
  %v403 = vsel %vm130, %v397, 0
  %405 = vmatpush.msra.mxu0 0.0
  %406 = vmatpush.msra.mxu0 0.0
  %407 = vmatpush.msra.mxu0 0.0
  %408 = vmatpush.msra.mxu0 0.0
  %409 = vmatpush.msra.mxu0 0.0
  %410 = vmatpush.msra.mxu0 0.0
  %411 = vmatpush.msra.mxu0 0.0
  %412 = vmatpush.msra.mxu0 0.0
  %413 = vmatpush.msra.mxu0 0.0
  %414 = vmatpush.msra.mxu0 0.0
  %415 = vmatpush.msra.mxu0 0.0
  %416 = vmatpush.msra.mxu0 0.0
  %417 = vmatpush.msra.mxu0 %v128
  %418 = vmatpush.msra.mxu0 %v127
  %419 = vmatpush.msra.mxu0 %v126
  %420 = vmatpush.msra.mxu0 %v125
  %421 = vmatmul.f32.gmra.mxu0 %v403
  %v422 = vpop.f32.mrf.mxu0
  %v423 = vadd.f32 0.0, %v422
  %424 = vdwg.mxu0
  %v425 = vadd.f32 %v402, %v423
  %v426 = vxor.u32 %v425, 2147483648
  %v427 = vmul.f32 %v426, 1.442695
  %v428 = vpow.pop %v427
  %v429 = vadd.f32 %v428, 1.0
  %v430 = vrcp.pop %v429
  %v431 = vmul.f32 %v429, %v430
  %v432 = vsub.f32 1.0, %v431
  %v433 = vmul.f32 %v430, %v432
  %v434 = vadd.f32 %v430, %v433
  %vm435 = vweird.f32 %v429
  %vm436 = vweird.f32 %v430
  %vm437 = vmor %vm435, %vm436
  %v438 = vsel %vm437, %v430, %v434
  %v439 = vand.u32 2147483647, %v429
  %vm440 = vcmp.eq.f32.partialorder %v439, 8.507059e+37
  %v441 = vand.u32 %v429, 2147483648
  %v442 = vor.u32 1.1754944e-38, %v441
  %v443 = vsel %vm440, %v442, %v438
  %v444 = vmul.f32 1.0, %v443
  %v445 = vtanh.pop %v425
  %v446 = vmul.f32 %v444, %v388
  %448 = vrot.lane.b32.xlu0 %v445, 64
  %v449 = vpop.permute.xlu0 %448
  %v451 = vmul.f32 %v444, %v449
  %453 = vrot.lane.b32.xlu0 %v451, 32
  %v454 = vpop.permute.xlu0 %453
  %v456 = vadd.f32 %v446, %v454
  %v457 = vtanh.pop %v456
  %459 = vrot.lane.b32.xlu0 %v457, 64
  %v460 = vpop.permute.xlu0 %459
  %v462 = vmul.f32 %v444, %v460
  %464 = vrot.lane.b32.xlu0 %v462, 32
  %v465 = vpop.permute.xlu0 %464
  %s467 = scalar_lea.vmem [#allocation2], 32
  %468 = vst.msk [vmem:[%s467] sm:$0xff] %vm130, %v465
  %s469 = scalar_lea.vmem [#allocation3], 40
  %v470 = vld [vmem:[%s469] sm:$0xff]
  %v471 = vsel %vm130, %v465, 0
  %473 = vmatpush.msra.mxu0 0.0
  %474 = vmatpush.msra.mxu0 0.0
  %475 = vmatpush.msra.mxu0 0.0
  %476 = vmatpush.msra.mxu0 0.0
  %477 = vmatpush.msra.mxu0 0.0
  %478 = vmatpush.msra.mxu0 0.0
  %479 = vmatpush.msra.mxu0 0.0
  %480 = vmatpush.msra.mxu0 0.0
  %481 = vmatpush.msra.mxu0 0.0
  %482 = vmatpush.msra.mxu0 0.0
  %483 = vmatpush.msra.mxu0 0.0
  %484 = vmatpush.msra.mxu0 0.0
  %485 = vmatpush.msra.mxu0 %v128
  %486 = vmatpush.msra.mxu0 %v127
  %487 = vmatpush.msra.mxu0 %v126
  %488 = vmatpush.msra.mxu0 %v125
  %489 = vmatmul.f32.gmra.mxu0 %v471
  %v490 = vpop.f32.mrf.mxu0
  %v491 = vadd.f32 0.0, %v490
  %492 = vdwg.mxu0
  %v493 = vadd.f32 %v470, %v491
  %v494 = vxor.u32 %v493, 2147483648
  %v495 = vmul.f32 %v494, 1.442695
  %v496 = vpow.pop %v495
  %v497 = vadd.f32 %v496, 1.0
  %v498 = vrcp.pop %v497
  %v499 = vmul.f32 %v497, %v498
  %v500 = vsub.f32 1.0, %v499
  %v501 = vmul.f32 %v498, %v500
  %v502 = vadd.f32 %v498, %v501
  %vm503 = vweird.f32 %v497
  %vm504 = vweird.f32 %v498
  %vm505 = vmor %vm503, %vm504
  %v506 = vsel %vm505, %v498, %v502
  %v507 = vand.u32 2147483647, %v497
  %vm508 = vcmp.eq.f32.partialorder %v507, 8.507059e+37
  %v509 = vand.u32 %v497, 2147483648
  %v510 = vor.u32 1.1754944e-38, %v509
  %v511 = vsel %vm508, %v510, %v506
  %v512 = vmul.f32 1.0, %v511
  %v513 = vtanh.pop %v493
  %v514 = vmul.f32 %v512, %v456
  %516 = vrot.lane.b32.xlu0 %v513, 64
  %v517 = vpop.permute.xlu0 %516
  %v519 = vmul.f32 %v512, %v517
  %521 = vrot.lane.b32.xlu0 %v519, 32
  %v522 = vpop.permute.xlu0 %521
  %v524 = vadd.f32 %v514, %v522
  %v525 = vtanh.pop %v524
  %527 = vrot.lane.b32.xlu0 %v525, 64
  %v528 = vpop.permute.xlu0 %527
  %v530 = vmul.f32 %v512, %v528
  %532 = vrot.lane.b32.xlu0 %v530, 32
  %v533 = vpop.permute.xlu0 %532
  %s535 = scalar_lea.vmem [#allocation2], 40
  %536 = vst.msk [vmem:[%s535] sm:$0xff] %vm130, %v533
  %s537 = scalar_lea.vmem [#allocation3], 48
  %v538 = vld [vmem:[%s537] sm:$0xff]
  %v539 = vsel %vm130, %v533, 0
  %541 = vmatpush.msra.mxu0 0.0
  %542 = vmatpush.msra.mxu0 0.0
  %543 = vmatpush.msra.mxu0 0.0
  %544 = vmatpush.msra.mxu0 0.0
  %545 = vmatpush.msra.mxu0 0.0
  %546 = vmatpush.msra.mxu0 0.0
  %547 = vmatpush.msra.mxu0 0.0
  %548 = vmatpush.msra.mxu0 0.0
  %549 = vmatpush.msra.mxu0 0.0
  %550 = vmatpush.msra.mxu0 0.0
  %551 = vmatpush.msra.mxu0 0.0
  %552 = vmatpush.msra.mxu0 0.0
  %553 = vmatpush.msra.mxu0 %v128
  %554 = vmatpush.msra.mxu0 %v127
  %555 = vmatpush.msra.mxu0 %v126
  %556 = vmatpush.msra.mxu0 %v125
  %557 = vmatmul.f32.gmra.mxu0 %v539
  %v558 = vpop.f32.mrf.mxu0
  %v559 = vadd.f32 0.0, %v558
  %560 = vdwg.mxu0
  %v561 = vadd.f32 %v538, %v559
  %v562 = vxor.u32 %v561, 2147483648
  %v563 = vmul.f32 %v562, 1.442695
  %v564 = vpow.pop %v563
  %v565 = vadd.f32 %v564, 1.0
  %v566 = vrcp.pop %v565
  %v567 = vmul.f32 %v565, %v566
  %v568 = vsub.f32 1.0, %v567
  %v569 = vmul.f32 %v566, %v568
  %v570 = vadd.f32 %v566, %v569
  %vm571 = vweird.f32 %v565
  %vm572 = vweird.f32 %v566
  %vm573 = vmor %vm571, %vm572
  %v574 = vsel %vm573, %v566, %v570
  %v575 = vand.u32 2147483647, %v565
  %vm576 = vcmp.eq.f32.partialorder %v575, 8.507059e+37
  %v577 = vand.u32 %v565, 2147483648
  %v578 = vor.u32 1.1754944e-38, %v577
  %v579 = vsel %vm576, %v578, %v574
  %v580 = vmul.f32 1.0, %v579
  %v581 = vtanh.pop %v561
  %v582 = vmul.f32 %v580, %v524
  %584 = vrot.lane.b32.xlu0 %v581, 64
  %v585 = vpop.permute.xlu0 %584
  %v587 = vmul.f32 %v580, %v585
  %589 = vrot.lane.b32.xlu0 %v587, 32
  %v590 = vpop.permute.xlu0 %589
  %v592 = vadd.f32 %v582, %v590
  %v593 = vtanh.pop %v592
  %595 = vrot.lane.b32.xlu0 %v593, 64
  %v596 = vpop.permute.xlu0 %595
  %v598 = vmul.f32 %v580, %v596
  %600 = vrot.lane.b32.xlu0 %v598, 32
  %v601 = vpop.permute.xlu0 %600
  %s603 = scalar_lea.vmem [#allocation2], 48
  %604 = vst.msk [vmem:[%s603] sm:$0xff] %vm130, %v601
  %s605 = scalar_lea.vmem [#allocation3], 56
  %v606 = vld [vmem:[%s605] sm:$0xff]
  %v607 = vsel %vm130, %v601, 0
  %609 = vmatpush.msra.mxu0 0.0
  %610 = vmatpush.msra.mxu0 0.0
  %611 = vmatpush.msra.mxu0 0.0
  %612 = vmatpush.msra.mxu0 0.0
  %613 = vmatpush.msra.mxu0 0.0
  %614 = vmatpush.msra.mxu0 0.0
  %615 = vmatpush.msra.mxu0 0.0
  %616 = vmatpush.msra.mxu0 0.0
  %617 = vmatpush.msra.mxu0 0.0
  %618 = vmatpush.msra.mxu0 0.0
  %619 = vmatpush.msra.mxu0 0.0
  %620 = vmatpush.msra.mxu0 0.0
  %621 = vmatpush.msra.mxu0 %v128
  %622 = vmatpush.msra.mxu0 %v127
  %623 = vmatpush.msra.mxu0 %v126
  %624 = vmatpush.msra.mxu0 %v125
  %625 = vmatmul.f32.gmra.mxu0 %v607
  %v626 = vpop.f32.mrf.mxu0
  %v627 = vadd.f32 0.0, %v626
  %628 = vdwg.mxu0
  %v629 = vadd.f32 %v606, %v627
  %v630 = vxor.u32 %v629, 2147483648
  %v631 = vmul.f32 %v630, 1.442695
  %v632 = vpow.pop %v631
  %v633 = vadd.f32 %v632, 1.0
  %v634 = vrcp.pop %v633
  %v635 = vmul.f32 %v633, %v634
  %v636 = vsub.f32 1.0, %v635
  %v637 = vmul.f32 %v634, %v636
  %v638 = vadd.f32 %v634, %v637
  %vm639 = vweird.f32 %v633
  %vm640 = vweird.f32 %v634
  %vm641 = vmor %vm639, %vm640
  %v642 = vsel %vm641, %v634, %v638
  %v643 = vand.u32 2147483647, %v633
  %vm644 = vcmp.eq.f32.partialorder %v643, 8.507059e+37
  %v645 = vand.u32 %v633, 2147483648
  %v646 = vor.u32 1.1754944e-38, %v645
  %v647 = vsel %vm644, %v646, %v642
  %v648 = vmul.f32 1.0, %v647
  %v649 = vtanh.pop %v629
  %v650 = vmul.f32 %v648, %v592
  %652 = vrot.lane.b32.xlu0 %v649, 64
  %v653 = vpop.permute.xlu0 %652
  %v655 = vmul.f32 %v648, %v653
  %657 = vrot.lane.b32.xlu0 %v655, 32
  %v658 = vpop.permute.xlu0 %657
  %v660 = vadd.f32 %v650, %v658
  %v661 = vtanh.pop %v660
  %663 = vrot.lane.b32.xlu0 %v661, 64
  %v664 = vpop.permute.xlu0 %663
  %v666 = vmul.f32 %v648, %v664
  %668 = vrot.lane.b32.xlu0 %v666, 32
  %v669 = vpop.permute.xlu0 %668
  %s671 = scalar_lea.vmem [#allocation2], 56
  %672 = vst.msk [vmem:[%s671] sm:$0xff] %vm130, %v669
  %v673 = vld [vmem:[#allocation2] sm:$0xff]
  %v674 = vld [vmem:[#allocation2 + $0x8] sm:$0xff]
  %v675 = vld [vmem:[#allocation2 + $0x10] sm:$0xff]
  %v676 = vld [vmem:[#allocation2 + $0x18] sm:$0xff]
  %v677 = vld [vmem:[#allocation2 + $0x20] sm:$0xff]
  %v678 = vld [vmem:[#allocation2 + $0x28] sm:$0xff]
  %v679 = vld [vmem:[#allocation2 + $0x30] sm:$0xff]
  %v680 = vld [vmem:[#allocation2 + $0x38] sm:$0xff]
  %v681 = vld [vmem:[%s2] sm:$0xff]
  %v682 = vld [vmem:[%s2 + $0x8] sm:$0xff]
  %v683 = vld [vmem:[%s2 + $0x10] sm:$0xff]
  %v684 = vld [vmem:[%s2 + $0x18] sm:$0xff]
  %v685 = vld [vmem:[%s6] sm:$0x1]
  %v687 = vperm.slane %v685, 0
  %v690 = vsel %vm130, %v673, 0
  %v693 = vsel %vm130, %v674, 0
  %v696 = vsel %vm130, %v675, 0
  %v699 = vsel %vm130, %v676, 0
  %v702 = vsel %vm130, %v677, 0
  %v705 = vsel %vm130, %v678, 0
  %v708 = vsel %vm130, %v679, 0
  %v711 = vsel %vm130, %v680, 0
  %713 = vmatpush.msra.mxu0 0.0
  %714 = vmatpush.msra.mxu0 0.0
  %715 = vmatpush.msra.mxu0 0.0
  %716 = vmatpush.msra.mxu0 0.0
  %717 = vmatpush.msra.mxu0 0.0
  %718 = vmatpush.msra.mxu0 0.0
  %719 = vmatpush.msra.mxu0 0.0
  %720 = vmatpush.msra.mxu0 0.0
  %721 = vmatpush.msra.mxu0 0.0
  %722 = vmatpush.msra.mxu0 0.0
  %723 = vmatpush.msra.mxu0 0.0
  %724 = vmatpush.msra.mxu0 0.0
  %725 = vmatpush.msra.mxu0 %v684
  %726 = vmatpush.msra.mxu0 %v683
  %727 = vmatpush.msra.mxu0 %v682
  %728 = vmatpush.msra.mxu0 %v681
  %729 = vmatmul.f32.gmra.mxu0 %v690
  %v730 = vpop.f32.mrf.mxu0
  %v731 = vadd.f32 %v687, %v730
  %732 = vmatmul.f32.gmra.mxu0 %v693
  %v733 = vpop.f32.mrf.mxu0
  %v734 = vadd.f32 %v687, %v733
  %735 = vmatmul.f32.gmra.mxu0 %v696
  %v736 = vpop.f32.mrf.mxu0
  %v737 = vadd.f32 %v687, %v736
  %738 = vmatmul.f32.gmra.mxu0 %v699
  %v739 = vpop.f32.mrf.mxu0
  %v740 = vadd.f32 %v687, %v739
  %741 = vmatmul.f32.gmra.mxu0 %v702
  %v742 = vpop.f32.mrf.mxu0
  %v743 = vadd.f32 %v687, %v742
  %744 = vmatmul.f32.gmra.mxu0 %v705
  %v745 = vpop.f32.mrf.mxu0
  %v746 = vadd.f32 %v687, %v745
  %747 = vmatmul.f32.gmra.mxu0 %v708
  %v748 = vpop.f32.mrf.mxu0
  %v749 = vadd.f32 %v687, %v748
  %750 = vmatmul.f32.gmra.mxu0 %v711
  %v751 = vpop.f32.mrf.mxu0
  %v752 = vadd.f32 %v687, %v751
  %753 = vdwg.mxu0
  %754 = vst [vmem:[#allocation3] sm:$0xff] %v731
  %755 = vst [vmem:[#allocation3 + $0x8] sm:$0xff] %v734
  %756 = vst [vmem:[#allocation3 + $0x10] sm:$0xff] %v737
  %757 = vst [vmem:[#allocation3 + $0x18] sm:$0xff] %v740
  %758 = vst [vmem:[#allocation3 + $0x20] sm:$0xff] %v743
  %759 = vst [vmem:[#allocation3 + $0x28] sm:$0xff] %v746
  %760 = vst [vmem:[#allocation3 + $0x30] sm:$0xff] %v749
  %761 = vst [vmem:[#allocation3 + $0x38] sm:$0xff] %v752
  %v762 = vld [vmem:[%s4] sm:$0xff]
  %v763 = vld [vmem:[%s4 + $0x8] sm:$0xff]
  %v764 = vld [vmem:[%s4 + $0x10] sm:$0xff]
  %v765 = vld [vmem:[%s4 + $0x18] sm:$0xff]
  %v766 = vld [vmem:[#allocation3] sm:$0xff]
  %767 = vmatpush.msra.mxu0 0.0
  %768 = vmatpush.msra.mxu0 0.0
  %769 = vmatpush.msra.mxu0 0.0
  %770 = vmatpush.msra.mxu0 0.0
  %771 = vmatpush.msra.mxu0 0.0
  %772 = vmatpush.msra.mxu0 0.0
  %773 = vmatpush.msra.mxu0 0.0
  %774 = vmatpush.msra.mxu0 0.0
  %775 = vmatpush.msra.mxu0 0.0
  %776 = vmatpush.msra.mxu0 0.0
  %777 = vmatpush.msra.mxu0 0.0
  %778 = vmatpush.msra.mxu0 0.0
  %779 = vmatpush.msra.mxu0 %v765
  %780 = vmatpush.msra.mxu0 %v764
  %781 = vmatpush.msra.mxu0 %v763
  %782 = vmatpush.msra.mxu0 %v762
  %783 = vmatmul.f32.gmra.mxu0 %v132
  %v784 = vpop.f32.mrf.mxu0
  %v785 = vadd.f32 0.0, %v784
  %786 = vdwg.mxu0
  %v787 = vadd.f32 %v766, %v785
  %v788 = vxor.u32 %v787, 2147483648
  %v789 = vmul.f32 %v788, 1.442695
  %v790 = vpow.pop %v789
  %v791 = vadd.f32 %v790, 1.0
  %v792 = vrcp.pop %v791
  %v793 = vmul.f32 %v791, %v792
  %v794 = vsub.f32 1.0, %v793
  %v795 = vmul.f32 %v792, %v794
  %v796 = vadd.f32 %v792, %v795
  %vm797 = vweird.f32 %v791
  %vm798 = vweird.f32 %v792
  %vm799 = vmor %vm797, %vm798
  %v800 = vsel %vm799, %v792, %v796
  %v801 = vand.u32 2147483647, %v791
  %vm802 = vcmp.eq.f32.partialorder %v801, 8.507059e+37
  %v803 = vand.u32 %v791, 2147483648
  %v804 = vor.u32 1.1754944e-38, %v803
  %v805 = vsel %vm802, %v804, %v800
  %v806 = vmul.f32 1.0, %v805
  %v807 = vtanh.pop %v787
  %v808 = vmul.f32 %v806, 0.0
  %810 = vrot.lane.b32.xlu0 %v807, 64
  %v811 = vpop.permute.xlu0 %810
  %v813 = vmul.f32 %v806, %v811
  %815 = vrot.lane.b32.xlu0 %v813, 32
  %v816 = vpop.permute.xlu0 %815
  %v818 = vadd.f32 %v808, %v816
  %v819 = vtanh.pop %v818
  %821 = vrot.lane.b32.xlu0 %v819, 64
  %v822 = vpop.permute.xlu0 %821
  %v824 = vmul.f32 %v806, %v822
  %826 = vrot.lane.b32.xlu0 %v824, 32
  %v827 = vpop.permute.xlu0 %826
  %829 = vst.msk [vmem:[#allocation2] sm:$0xff] %vm130, %v827
  %v830 = vld [vmem:[%s197] sm:$0xff]
  %v831 = vsel %vm130, %v827, 0
  %833 = vmatpush.msra.mxu0 0.0
  %834 = vmatpush.msra.mxu0 0.0
  %835 = vmatpush.msra.mxu0 0.0
  %836 = vmatpush.msra.mxu0 0.0
  %837 = vmatpush.msra.mxu0 0.0
  %838 = vmatpush.msra.mxu0 0.0
  %839 = vmatpush.msra.mxu0 0.0
  %840 = vmatpush.msra.mxu0 0.0
  %841 = vmatpush.msra.mxu0 0.0
  %842 = vmatpush.msra.mxu0 0.0
  %843 = vmatpush.msra.mxu0 0.0
  %844 = vmatpush.msra.mxu0 0.0
  %845 = vmatpush.msra.mxu0 %v765
  %846 = vmatpush.msra.mxu0 %v764
  %847 = vmatpush.msra.mxu0 %v763
  %848 = vmatpush.msra.mxu0 %v762
  %849 = vmatmul.f32.gmra.mxu0 %v831
  %v850 = vpop.f32.mrf.mxu0
  %v851 = vadd.f32 0.0, %v850
  %852 = vdwg.mxu0
  %v853 = vadd.f32 %v830, %v851
  %v854 = vxor.u32 %v853, 2147483648
  %v855 = vmul.f32 %v854, 1.442695
  %v856 = vpow.pop %v855
  %v857 = vadd.f32 %v856, 1.0
  %v858 = vrcp.pop %v857
  %v859 = vmul.f32 %v857, %v858
  %v860 = vsub.f32 1.0, %v859
  %v861 = vmul.f32 %v858, %v860
  %v862 = vadd.f32 %v858, %v861
  %vm863 = vweird.f32 %v857
  %vm864 = vweird.f32 %v858
  %vm865 = vmor %vm863, %vm864
  %v866 = vsel %vm865, %v858, %v862
  %v867 = vand.u32 2147483647, %v857
  %vm868 = vcmp.eq.f32.partialorder %v867, 8.507059e+37
  %v869 = vand.u32 %v857, 2147483648
  %v870 = vor.u32 1.1754944e-38, %v869
  %v871 = vsel %vm868, %v870, %v866
  %v872 = vmul.f32 1.0, %v871
  %v873 = vtanh.pop %v853
  %v874 = vmul.f32 %v872, %v818
  %876 = vrot.lane.b32.xlu0 %v873, 64
  %v877 = vpop.permute.xlu0 %876
  %v879 = vmul.f32 %v872, %v877
  %881 = vrot.lane.b32.xlu0 %v879, 32
  %v882 = vpop.permute.xlu0 %881
  %v884 = vadd.f32 %v874, %v882
  %v885 = vtanh.pop %v884
  %887 = vrot.lane.b32.xlu0 %v885, 64
  %v888 = vpop.permute.xlu0 %887
  %v890 = vmul.f32 %v872, %v888
  %892 = vrot.lane.b32.xlu0 %v890, 32
  %v893 = vpop.permute.xlu0 %892
  %895 = vst.msk [vmem:[%s263] sm:$0xff] %vm130, %v893
  %v896 = vld [vmem:[%s265] sm:$0xff]
  %v897 = vsel %vm130, %v893, 0
  %899 = vmatpush.msra.mxu0 0.0
  %900 = vmatpush.msra.mxu0 0.0
  %901 = vmatpush.msra.mxu0 0.0
  %902 = vmatpush.msra.mxu0 0.0
  %903 = vmatpush.msra.mxu0 0.0
  %904 = vmatpush.msra.mxu0 0.0
  %905 = vmatpush.msra.mxu0 0.0
  %906 = vmatpush.msra.mxu0 0.0
  %907 = vmatpush.msra.mxu0 0.0
  %908 = vmatpush.msra.mxu0 0.0
  %909 = vmatpush.msra.mxu0 0.0
  %910 = vmatpush.msra.mxu0 0.0
  %911 = vmatpush.msra.mxu0 %v765
  %912 = vmatpush.msra.mxu0 %v764
  %913 = vmatpush.msra.mxu0 %v763
  %914 = vmatpush.msra.mxu0 %v762
  %915 = vmatmul.f32.gmra.mxu0 %v897
  %v916 = vpop.f32.mrf.mxu0
  %v917 = vadd.f32 0.0, %v916
  %918 = vdwg.mxu0
  %v919 = vadd.f32 %v896, %v917
  %v920 = vxor.u32 %v919, 2147483648
  %v921 = vmul.f32 %v920, 1.442695
  %v922 = vpow.pop %v921
  %v923 = vadd.f32 %v922, 1.0
  %v924 = vrcp.pop %v923
  %v925 = vmul.f32 %v923, %v924
  %v926 = vsub.f32 1.0, %v925
  %v927 = vmul.f32 %v924, %v926
  %v928 = vadd.f32 %v924, %v927
  %vm929 = vweird.f32 %v923
  %vm930 = vweird.f32 %v924
  %vm931 = vmor %vm929, %vm930
  %v932 = vsel %vm931, %v924, %v928
  %v933 = vand.u32 2147483647, %v923
  %vm934 = vcmp.eq.f32.partialorder %v933, 8.507059e+37
  %v935 = vand.u32 %v923, 2147483648
  %v936 = vor.u32 1.1754944e-38, %v935
  %v937 = vsel %vm934, %v936, %v932
  %v938 = vmul.f32 1.0, %v937
  %v939 = vtanh.pop %v919
  %v940 = vmul.f32 %v938, %v884
  %942 = vrot.lane.b32.xlu0 %v939, 64
  %v943 = vpop.permute.xlu0 %942
  %v945 = vmul.f32 %v938, %v943
  %947 = vrot.lane.b32.xlu0 %v945, 32
  %v948 = vpop.permute.xlu0 %947
  %v950 = vadd.f32 %v940, %v948
  %v951 = vtanh.pop %v950
  %953 = vrot.lane.b32.xlu0 %v951, 64
  %v954 = vpop.permute.xlu0 %953
  %v956 = vmul.f32 %v938, %v954
  %958 = vrot.lane.b32.xlu0 %v956, 32
  %v959 = vpop.permute.xlu0 %958
  %961 = vst.msk [vmem:[%s331] sm:$0xff] %vm130, %v959
  %v962 = vld [vmem:[%s333] sm:$0xff]
  %v963 = vsel %vm130, %v959, 0
  %965 = vmatpush.msra.mxu0 0.0
  %966 = vmatpush.msra.mxu0 0.0
  %967 = vmatpush.msra.mxu0 0.0
  %968 = vmatpush.msra.mxu0 0.0
  %969 = vmatpush.msra.mxu0 0.0
  %970 = vmatpush.msra.mxu0 0.0
  %971 = vmatpush.msra.mxu0 0.0
  %972 = vmatpush.msra.mxu0 0.0
  %973 = vmatpush.msra.mxu0 0.0
  %974 = vmatpush.msra.mxu0 0.0
  %975 = vmatpush.msra.mxu0 0.0
  %976 = vmatpush.msra.mxu0 0.0
  %977 = vmatpush.msra.mxu0 %v765
  %978 = vmatpush.msra.mxu0 %v764
  %979 = vmatpush.msra.mxu0 %v763
  %980 = vmatpush.msra.mxu0 %v762
  %981 = vmatmul.f32.gmra.mxu0 %v963
  %v982 = vpop.f32.mrf.mxu0
  %v983 = vadd.f32 0.0, %v982
  %984 = vdwg.mxu0
  %v985 = vadd.f32 %v962, %v983
  %v986 = vxor.u32 %v985, 2147483648
  %v987 = vmul.f32 %v986, 1.442695
  %v988 = vpow.pop %v987
  %v989 = vadd.f32 %v988, 1.0
  %v990 = vrcp.pop %v989
  %v991 = vmul.f32 %v989, %v990
  %v992 = vsub.f32 1.0, %v991
  %v993 = vmul.f32 %v990, %v992
  %v994 = vadd.f32 %v990, %v993
  %vm995 = vweird.f32 %v989
  %vm996 = vweird.f32 %v990
  %vm997 = vmor %vm995, %vm996
  %v998 = vsel %vm997, %v990, %v994
  %v999 = vand.u32 2147483647, %v989
  %vm1000 = vcmp.eq.f32.partialorder %v999, 8.507059e+37
  %v1001 = vand.u32 %v989, 2147483648
  %v1002 = vor.u32 1.1754944e-38, %v1001
  %v1003 = vsel %vm1000, %v1002, %v998
  %v1004 = vmul.f32 1.0, %v1003
  %v1005 = vtanh.pop %v985
  %v1006 = vmul.f32 %v1004, %v950
  %1008 = vrot.lane.b32.xlu0 %v1005, 64
  %v1009 = vpop.permute.xlu0 %1008
  %v1011 = vmul.f32 %v1004, %v1009
  %1013 = vrot.lane.b32.xlu0 %v1011, 32
  %v1014 = vpop.permute.xlu0 %1013
  %v1016 = vadd.f32 %v1006, %v1014
  %v1017 = vtanh.pop %v1016
  %1019 = vrot.lane.b32.xlu0 %v1017, 64
  %v1020 = vpop.permute.xlu0 %1019
  %v1022 = vmul.f32 %v1004, %v1020
  %1024 = vrot.lane.b32.xlu0 %v1022, 32
  %v1025 = vpop.permute.xlu0 %1024
  %1027 = vst.msk [vmem:[%s399] sm:$0xff] %vm130, %v1025
  %v1028 = vld [vmem:[%s401] sm:$0xff]
  %v1029 = vsel %vm130, %v1025, 0
  %1031 = vmatpush.msra.mxu0 0.0
  %1032 = vmatpush.msra.mxu0 0.0
  %1033 = vmatpush.msra.mxu0 0.0
  %1034 = vmatpush.msra.mxu0 0.0
  %1035 = vmatpush.msra.mxu0 0.0
  %1036 = vmatpush.msra.mxu0 0.0
  %1037 = vmatpush.msra.mxu0 0.0
  %1038 = vmatpush.msra.mxu0 0.0
  %1039 = vmatpush.msra.mxu0 0.0
  %1040 = vmatpush.msra.mxu0 0.0
  %1041 = vmatpush.msra.mxu0 0.0
  %1042 = vmatpush.msra.mxu0 0.0
  %1043 = vmatpush.msra.mxu0 %v765
  %1044 = vmatpush.msra.mxu0 %v764
  %1045 = vmatpush.msra.mxu0 %v763
  %1046 = vmatpush.msra.mxu0 %v762
  %1047 = vmatmul.f32.gmra.mxu0 %v1029
  %v1048 = vpop.f32.mrf.mxu0
  %v1049 = vadd.f32 0.0, %v1048
  %1050 = vdwg.mxu0
  %v1051 = vadd.f32 %v1028, %v1049
  %v1052 = vxor.u32 %v1051, 2147483648
  %v1053 = vmul.f32 %v1052, 1.442695
  %v1054 = vpow.pop %v1053
  %v1055 = vadd.f32 %v1054, 1.0
  %v1056 = vrcp.pop %v1055
  %v1057 = vmul.f32 %v1055, %v1056
  %v1058 = vsub.f32 1.0, %v1057
  %v1059 = vmul.f32 %v1056, %v1058
  %v1060 = vadd.f32 %v1056, %v1059
  %vm1061 = vweird.f32 %v1055
  %vm1062 = vweird.f32 %v1056
  %vm1063 = vmor %vm1061, %vm1062
  %v1064 = vsel %vm1063, %v1056, %v1060
  %v1065 = vand.u32 2147483647, %v1055
  %vm1066 = vcmp.eq.f32.partialorder %v1065, 8.507059e+37
  %v1067 = vand.u32 %v1055, 2147483648
  %v1068 = vor.u32 1.1754944e-38, %v1067
  %v1069 = vsel %vm1066, %v1068, %v1064
  %v1070 = vmul.f32 1.0, %v1069
  %v1071 = vtanh.pop %v1051
  %v1072 = vmul.f32 %v1070, %v1016
  %1074 = vrot.lane.b32.xlu0 %v1071, 64
  %v1075 = vpop.permute.xlu0 %1074
  %v1077 = vmul.f32 %v1070, %v1075
  %1079 = vrot.lane.b32.xlu0 %v1077, 32
  %v1080 = vpop.permute.xlu0 %1079
  %v1082 = vadd.f32 %v1072, %v1080
  %v1083 = vtanh.pop %v1082
  %1085 = vrot.lane.b32.xlu0 %v1083, 64
  %v1086 = vpop.permute.xlu0 %1085
  %v1088 = vmul.f32 %v1070, %v1086
  %1090 = vrot.lane.b32.xlu0 %v1088, 32
  %v1091 = vpop.permute.xlu0 %1090
  %1093 = vst.msk [vmem:[%s467] sm:$0xff] %vm130, %v1091
  %v1094 = vld [vmem:[%s469] sm:$0xff]
  %v1095 = vsel %vm130, %v1091, 0
  %1097 = vmatpush.msra.mxu0 0.0
  %1098 = vmatpush.msra.mxu0 0.0
  %1099 = vmatpush.msra.mxu0 0.0
  %1100 = vmatpush.msra.mxu0 0.0
  %1101 = vmatpush.msra.mxu0 0.0
  %1102 = vmatpush.msra.mxu0 0.0
  %1103 = vmatpush.msra.mxu0 0.0
  %1104 = vmatpush.msra.mxu0 0.0
  %1105 = vmatpush.msra.mxu0 0.0
  %1106 = vmatpush.msra.mxu0 0.0
  %1107 = vmatpush.msra.mxu0 0.0
  %1108 = vmatpush.msra.mxu0 0.0
  %1109 = vmatpush.msra.mxu0 %v765
  %1110 = vmatpush.msra.mxu0 %v764
  %1111 = vmatpush.msra.mxu0 %v763
  %1112 = vmatpush.msra.mxu0 %v762
  %1113 = vmatmul.f32.gmra.mxu0 %v1095
  %v1114 = vpop.f32.mrf.mxu0
  %v1115 = vadd.f32 0.0, %v1114
  %1116 = vdwg.mxu0
  %v1117 = vadd.f32 %v1094, %v1115
  %v1118 = vxor.u32 %v1117, 2147483648
  %v1119 = vmul.f32 %v1118, 1.442695
  %v1120 = vpow.pop %v1119
  %v1121 = vadd.f32 %v1120, 1.0
  %v1122 = vrcp.pop %v1121
  %v1123 = vmul.f32 %v1121, %v1122
  %v1124 = vsub.f32 1.0, %v1123
  %v1125 = vmul.f32 %v1122, %v1124
  %v1126 = vadd.f32 %v1122, %v1125
  %vm1127 = vweird.f32 %v1121
  %vm1128 = vweird.f32 %v1122
  %vm1129 = vmor %vm1127, %vm1128
  %v1130 = vsel %vm1129, %v1122, %v1126
  %v1131 = vand.u32 2147483647, %v1121
  %vm1132 = vcmp.eq.f32.partialorder %v1131, 8.507059e+37
  %v1133 = vand.u32 %v1121, 2147483648
  %v1134 = vor.u32 1.1754944e-38, %v1133
  %v1135 = vsel %vm1132, %v1134, %v1130
  %v1136 = vmul.f32 1.0, %v1135
  %v1137 = vtanh.pop %v1117
  %v1138 = vmul.f32 %v1136, %v1082
  %1140 = vrot.lane.b32.xlu0 %v1137, 64
  %v1141 = vpop.permute.xlu0 %1140
  %v1143 = vmul.f32 %v1136, %v1141
  %1145 = vrot.lane.b32.xlu0 %v1143, 32
  %v1146 = vpop.permute.xlu0 %1145
  %v1148 = vadd.f32 %v1138, %v1146
  %v1149 = vtanh.pop %v1148
  %1151 = vrot.lane.b32.xlu0 %v1149, 64
  %v1152 = vpop.permute.xlu0 %1151
  %v1154 = vmul.f32 %v1136, %v1152
  %1156 = vrot.lane.b32.xlu0 %v1154, 32
  %v1157 = vpop.permute.xlu0 %1156
  %1159 = vst.msk [vmem:[%s535] sm:$0xff] %vm130, %v1157
  %v1160 = vld [vmem:[%s537] sm:$0xff]
  %v1161 = vsel %vm130, %v1157, 0
  %1163 = vmatpush.msra.mxu0 0.0
  %1164 = vmatpush.msra.mxu0 0.0
  %1165 = vmatpush.msra.mxu0 0.0
  %1166 = vmatpush.msra.mxu0 0.0
  %1167 = vmatpush.msra.mxu0 0.0
  %1168 = vmatpush.msra.mxu0 0.0
  %1169 = vmatpush.msra.mxu0 0.0
  %1170 = vmatpush.msra.mxu0 0.0
  %1171 = vmatpush.msra.mxu0 0.0
  %1172 = vmatpush.msra.mxu0 0.0
  %1173 = vmatpush.msra.mxu0 0.0
  %1174 = vmatpush.msra.mxu0 0.0
  %1175 = vmatpush.msra.mxu0 %v765
  %1176 = vmatpush.msra.mxu0 %v764
  %1177 = vmatpush.msra.mxu0 %v763
  %1178 = vmatpush.msra.mxu0 %v762
  %1179 = vmatmul.f32.gmra.mxu0 %v1161
  %v1180 = vpop.f32.mrf.mxu0
  %v1181 = vadd.f32 0.0, %v1180
  %1182 = vdwg.mxu0
  %v1183 = vadd.f32 %v1160, %v1181
  %v1184 = vxor.u32 %v1183, 2147483648
  %v1185 = vmul.f32 %v1184, 1.442695
  %v1186 = vpow.pop %v1185
  %v1187 = vadd.f32 %v1186, 1.0
  %v1188 = vrcp.pop %v1187
  %v1189 = vmul.f32 %v1187, %v1188
  %v1190 = vsub.f32 1.0, %v1189
  %v1191 = vmul.f32 %v1188, %v1190
  %v1192 = vadd.f32 %v1188, %v1191
  %vm1193 = vweird.f32 %v1187
  %vm1194 = vweird.f32 %v1188
  %vm1195 = vmor %vm1193, %vm1194
  %v1196 = vsel %vm1195, %v1188, %v1192
  %v1197 = vand.u32 2147483647, %v1187
  %vm1198 = vcmp.eq.f32.partialorder %v1197, 8.507059e+37
  %v1199 = vand.u32 %v1187, 2147483648
  %v1200 = vor.u32 1.1754944e-38, %v1199
  %v1201 = vsel %vm1198, %v1200, %v1196
  %v1202 = vmul.f32 1.0, %v1201
  %v1203 = vtanh.pop %v1183
  %v1204 = vmul.f32 %v1202, %v1148
  %1206 = vrot.lane.b32.xlu0 %v1203, 64
  %v1207 = vpop.permute.xlu0 %1206
  %v1209 = vmul.f32 %v1202, %v1207
  %1211 = vrot.lane.b32.xlu0 %v1209, 32
  %v1212 = vpop.permute.xlu0 %1211
  %v1214 = vadd.f32 %v1204, %v1212
  %v1215 = vtanh.pop %v1214
  %1217 = vrot.lane.b32.xlu0 %v1215, 64
  %v1218 = vpop.permute.xlu0 %1217
  %v1220 = vmul.f32 %v1202, %v1218
  %1222 = vrot.lane.b32.xlu0 %v1220, 32
  %v1223 = vpop.permute.xlu0 %1222
  %1225 = vst.msk [vmem:[%s603] sm:$0xff] %vm130, %v1223
  %v1226 = vld [vmem:[%s605] sm:$0xff]
  %v1227 = vsel %vm130, %v1223, 0
  %1229 = vmatpush.msra.mxu0 0.0
  %1230 = vmatpush.msra.mxu0 0.0
  %1231 = vmatpush.msra.mxu0 0.0
  %1232 = vmatpush.msra.mxu0 0.0
  %1233 = vmatpush.msra.mxu0 0.0
  %1234 = vmatpush.msra.mxu0 0.0
  %1235 = vmatpush.msra.mxu0 0.0
  %1236 = vmatpush.msra.mxu0 0.0
  %1237 = vmatpush.msra.mxu0 0.0
  %1238 = vmatpush.msra.mxu0 0.0
  %1239 = vmatpush.msra.mxu0 0.0
  %1240 = vmatpush.msra.mxu0 0.0
  %1241 = vmatpush.msra.mxu0 %v765
  %1242 = vmatpush.msra.mxu0 %v764
  %1243 = vmatpush.msra.mxu0 %v763
  %1244 = vmatpush.msra.mxu0 %v762
  %1245 = vmatmul.f32.gmra.mxu0 %v1227
  %v1246 = vpop.f32.mrf.mxu0
  %v1247 = vadd.f32 0.0, %v1246
  %1248 = vdwg.mxu0
  %v1249 = vadd.f32 %v1226, %v1247
  %v1250 = vxor.u32 %v1249, 2147483648
  %v1251 = vmul.f32 %v1250, 1.442695
  %v1252 = vpow.pop %v1251
  %v1253 = vadd.f32 %v1252, 1.0
  %v1254 = vrcp.pop %v1253
  %v1255 = vmul.f32 %v1253, %v1254
  %v1256 = vsub.f32 1.0, %v1255
  %v1257 = vmul.f32 %v1254, %v1256
  %v1258 = vadd.f32 %v1254, %v1257
  %vm1259 = vweird.f32 %v1253
  %vm1260 = vweird.f32 %v1254
  %vm1261 = vmor %vm1259, %vm1260
  %v1262 = vsel %vm1261, %v1254, %v1258
  %v1263 = vand.u32 2147483647, %v1253
  %vm1264 = vcmp.eq.f32.partialorder %v1263, 8.507059e+37
  %v1265 = vand.u32 %v1253, 2147483648
  %v1266 = vor.u32 1.1754944e-38, %v1265
  %v1267 = vsel %vm1264, %v1266, %v1262
  %v1268 = vmul.f32 1.0, %v1267
  %v1269 = vtanh.pop %v1249
  %v1270 = vmul.f32 %v1268, %v1214
  %1272 = vrot.lane.b32.xlu0 %v1269, 64
  %v1273 = vpop.permute.xlu0 %1272
  %v1275 = vmul.f32 %v1268, %v1273
  %1277 = vrot.lane.b32.xlu0 %v1275, 32
  %v1278 = vpop.permute.xlu0 %1277
  %v1280 = vadd.f32 %v1270, %v1278
  %v1281 = vtanh.pop %v1280
  %1283 = vrot.lane.b32.xlu0 %v1281, 64
  %v1284 = vpop.permute.xlu0 %1283
  %v1286 = vmul.f32 %v1268, %v1284
  %1288 = vrot.lane.b32.xlu0 %v1286, 32
  %v1289 = vpop.permute.xlu0 %1288
  %1291 = vst.msk [vmem:[%s671] sm:$0xff] %vm130, %v1289
  %v1292 = vld [vmem:[%s7] sm:$0xff]
  %v1293 = vld [vmem:[%s7 + $0x8] sm:$0xff]
  %v1294 = vld [vmem:[%s7 + $0x10] sm:$0xff]
  %v1295 = vld [vmem:[%s7 + $0x18] sm:$0xff]
  %v1296 = vld [vmem:[#allocation4] sm:$0x1]
  %v1297 = vld [vmem:[#allocation2] sm:$0xff]
  %v1298 = vld [vmem:[#allocation2 + $0x8] sm:$0xff]
  %v1299 = vld [vmem:[#allocation2 + $0x10] sm:$0xff]
  %v1300 = vld [vmem:[#allocation2 + $0x18] sm:$0xff]
  %v1301 = vld [vmem:[#allocation2 + $0x20] sm:$0xff]
  %v1302 = vld [vmem:[#allocation2 + $0x28] sm:$0xff]
  %v1303 = vld [vmem:[#allocation2 + $0x30] sm:$0xff]
  %v1304 = vld [vmem:[#allocation2 + $0x38] sm:$0xff]
  %v1306 = vperm.slane %v1296, 0
  %v1309 = vsel %vm130, %v1297, 0
  %v1312 = vsel %vm130, %v1298, 0
  %v1315 = vsel %vm130, %v1299, 0
  %v1318 = vsel %vm130, %v1300, 0
  %v1321 = vsel %vm130, %v1301, 0
  %v1324 = vsel %vm130, %v1302, 0
  %v1327 = vsel %vm130, %v1303, 0
  %v1330 = vsel %vm130, %v1304, 0
  %1332 = vmatpush.msra.mxu0 0.0
  %1333 = vmatpush.msra.mxu0 0.0
  %1334 = vmatpush.msra.mxu0 0.0
  %1335 = vmatpush.msra.mxu0 0.0
  %1336 = vmatpush.msra.mxu0 0.0
  %1337 = vmatpush.msra.mxu0 0.0
  %1338 = vmatpush.msra.mxu0 0.0
  %1339 = vmatpush.msra.mxu0 0.0
  %1340 = vmatpush.msra.mxu0 0.0
  %1341 = vmatpush.msra.mxu0 0.0
  %1342 = vmatpush.msra.mxu0 0.0
  %1343 = vmatpush.msra.mxu0 0.0
  %1344 = vmatpush.msra.mxu0 %v1295
  %1345 = vmatpush.msra.mxu0 %v1294
  %1346 = vmatpush.msra.mxu0 %v1293
  %1347 = vmatpush.msra.mxu0 %v1292
  %1348 = vmatmul.f32.gmra.mxu0 %v1309
  %v1349 = vpop.f32.mrf.mxu0
  %v1350 = vadd.f32 %v1306, %v1349
  %1351 = vmatmul.f32.gmra.mxu0 %v1312
  %v1352 = vpop.f32.mrf.mxu0
  %v1353 = vadd.f32 %v1306, %v1352
  %1354 = vmatmul.f32.gmra.mxu0 %v1315
  %v1355 = vpop.f32.mrf.mxu0
  %v1356 = vadd.f32 %v1306, %v1355
  %1357 = vmatmul.f32.gmra.mxu0 %v1318
  %v1358 = vpop.f32.mrf.mxu0
  %v1359 = vadd.f32 %v1306, %v1358
  %1360 = vmatmul.f32.gmra.mxu0 %v1321
  %v1361 = vpop.f32.mrf.mxu0
  %v1362 = vadd.f32 %v1306, %v1361
  %1363 = vmatmul.f32.gmra.mxu0 %v1324
  %v1364 = vpop.f32.mrf.mxu0
  %v1365 = vadd.f32 %v1306, %v1364
  %1366 = vmatmul.f32.gmra.mxu0 %v1327
  %v1367 = vpop.f32.mrf.mxu0
  %v1368 = vadd.f32 %v1306, %v1367
  %1369 = vmatmul.f32.gmra.mxu0 %v1330
  %v1370 = vpop.f32.mrf.mxu0
  %v1371 = vadd.f32 %v1306, %v1370
  %1372 = vdwg.mxu0
  %vm1373 = vcmask 7168
  %1374 = vst.msk [vmem:[%s9] sm:$0xff] %vm1373, %v1350
  %1375 = vst.msk [vmem:[%s9 + $0x8] sm:$0xff] %vm1373, %v1353
  %1376 = vst.msk [vmem:[%s9 + $0x10] sm:$0xff] %vm1373, %v1356
  %1377 = vst.msk [vmem:[%s9 + $0x18] sm:$0xff] %vm1373, %v1359
  %1378 = vst.msk [vmem:[%s9 + $0x20] sm:$0xff] %vm1373, %v1362
  %1379 = vst.msk [vmem:[%s9 + $0x28] sm:$0xff] %vm1373, %v1365
  %1380 = vst.msk [vmem:[%s9 + $0x30] sm:$0xff] %vm1373, %v1368
  %1381 = vst.msk [vmem:[%s9 + $0x38] sm:$0xff] %vm1373, %v1371
  // Predicated region
  $region38: #{model_forward.1} parent=0 // pred_check
    _
  $region39: #{model_forward.1} parent=0 // pred_check_branch
    %1383 = sbr.rel (0) target = $region41
  $region40: #{model_forward.1} parent=0 // pred_region
    _
  $region41: #{model_forward.1} parent=0 // pred_fallthru
    _
  // Predicated region
  $region42: #{model_forward.1} parent=0 // pred_check
    _
  $region43: #{model_forward.1} parent=0 // pred_check_branch
    %1385 = sbr.rel (0) target = $region45
  $region44: #{model_forward.1} parent=0 // pred_region
    _
  $region45: #{model_forward.1} parent=0 // pred_fallthru
    _

</llo_original>
